<compile_context>
chip_gen: v7x
topology: tpu7x:2x2x1
jax: 0.10.0
libtpu: 0.0.40
codegen_flags: <defaults>
</compile_context>

<pallas_src>
import functools

import jax
import jax.numpy as jnp
from jax import lax
from jax.experimental import pallas as pl
from jax.experimental.pallas import tpu as pltpu


def _round_up(x, m):
    return (x + m - 1) // m * m


# ----------------------------------------------------------------------------
# Pallas kernel: one LSTM layer, grid over time chunks.
# Rows of x / out are time-major flattened: row = t * B_pad + b.
# Gate order follows torch.nn.LSTM: [i, f, g, o] stacked along the 4H axis.
# ----------------------------------------------------------------------------
def _lstm_chunk_kernel(x_ref, wih_ref, whh_ref, b_ref, h0_ref, c0_ref,
                       out_ref, hN_ref, cN_ref,
                       gx_scr, h_scr, c_scr,
                       *, n_steps, batch, l_total):
    H = h_scr.shape[-1]
    chunk = pl.program_id(0)

    # Carry init only on the first chunk (scratch persists across grid steps).
    @pl.when(chunk == 0)
    def _():
        h_scr[...] = h0_ref[...]
        c_scr[...] = c0_ref[...]

    # ---- Phase 1 (no sequential dependency): hoisted input projection for
    # the whole chunk as one MXU matmul with M = n_steps * batch rows; the
    # bias is folded in here (added once per chunk, not per timestep).
    gx_scr[...] = (
        jnp.dot(x_ref[...], wih_ref[...], preferred_element_type=jnp.float32)
        + b_ref[...]
    )

    whh = whh_ref[...]          # bf16 (H, 4H), reused by every timestep
    h = h_scr[...]              # f32 carry
    c = c_scr[...]

    # ---- Phase 2: the recurrence. n_steps is small & static -> fully
    # unrolled with static ref indices (== lax.fori_loop(..., unroll=True)).
    for t in range(n_steps):
        rows = pl.ds(t * batch, batch)
        gates = gx_scr[rows, :] + jnp.dot(
            h.astype(whh.dtype), whh, preferred_element_type=jnp.float32)

        i_g = jax.nn.sigmoid(gates[:, 0 * H:1 * H])
        f_g = jax.nn.sigmoid(gates[:, 1 * H:2 * H])
        g_g = jnp.tanh(gates[:, 2 * H:3 * H])
        o_g = jax.nn.sigmoid(gates[:, 3 * H:4 * H])

        c_new = f_g * c + i_g * g_g
        h_new = o_g * jnp.tanh(c_new)

        # Timesteps past the true length L (tail padding of the last chunk)
        # must not advance the carry so h_N / c_N stay exact.
        valid = (chunk * n_steps + t) < l_total
        h = jnp.where(valid, h_new, h)
        c = jnp.where(valid, c_new, c)

        out_ref[rows, :] = h_new.astype(out_ref.dtype)

    h_scr[...] = h
    c_scr[...] = c

    @pl.when(chunk == pl.num_programs(0) - 1)
    def _():
        hN_ref[...] = h
        cN_ref[...] = c


def lstm_layer_pallas(x_tm, w_ih_t, w_hh_t, b, h0, c0, *, t_chunk=4):
    """One LSTM layer over a time-major sequence.

    x_tm:   (L, B, E)  bf16   time-major inputs
    w_ih_t: (E, 4H)    bf16   torch W_ih transposed
    w_hh_t: (H, 4H)    bf16   torch W_hh transposed
    b:      (1, 4H)    f32    b_ih + b_hh
    h0, c0: (B, H)     f32
    Returns out (L, B, H) f32, h_N (B, H) f32, c_N (B, H) f32.

    t_chunk is tunable: larger chunks (e.g. 16-32) amortize per-grid-step
    overhead and give deeper DMA/compute overlap for long sequences.
    """
    L, B, E = x_tm.shape
    H = h0.shape[-1]
    # TODO(synk): H must be a multiple of 128 for lane-aligned gate slices;
    #             pad 4H otherwise.

    B_pad = max(_round_up(B, 8), 8)      # full sublane tiles
    T = t_chunk
    L_pad = _round_up(L, T)
    n_chunks = L_pad // T

    x_p = jnp.pad(x_tm, ((0, L_pad - L), (0, B_pad - B), (0, 0)))
    x2d = x_p.reshape(L_pad * B_pad, E)  # contiguous -> layout no-op in XLA
    h0_p = jnp.pad(h0, ((0, B_pad - B), (0, 0)))
    c0_p = jnp.pad(c0, ((0, B_pad - B), (0, 0)))

    kernel = functools.partial(_lstm_chunk_kernel,
                               n_steps=T, batch=B_pad, l_total=L)

    const = lambda shape: pl.BlockSpec(shape, lambda i: (0,) * len(shape))

    out2d, h_n, c_n = pl.pallas_call(
        kernel,
        out_shape=(
            jax.ShapeDtypeStruct((L_pad * B_pad, H), jnp.float32),
            jax.ShapeDtypeStruct((B_pad, H), jnp.float32),
            jax.ShapeDtypeStruct((B_pad, H), jnp.float32),
        ),
        grid=(n_chunks,),
        in_specs=[
            pl.BlockSpec((T * B_pad, E), lambda i: (i, 0)),   # x time-chunk
            const((E, 4 * H)),                                # W_ih^T
            const((H, 4 * H)),                                # W_hh^T
            const((1, 4 * H)),                                # b_ih + b_hh
            const((B_pad, H)),                                # h0
            const((B_pad, H)),                                # c0
        ],
        out_specs=[
            pl.BlockSpec((T * B_pad, H), lambda i: (i, 0)),   # dec_out chunk
            const((B_pad, H)),                                # h_N
            const((B_pad, H)),                                # c_N
        ],
        scratch_shapes=[
            pltpu.VMEM((T * B_pad, 4 * H), jnp.float32),      # hoisted x-proj
            pltpu.VMEM((B_pad, H), jnp.float32),              # h carry
            pltpu.VMEM((B_pad, H), jnp.float32),              # c carry
        ],
        compiler_params=pltpu.CompilerParams(
            dimension_semantics=("arbitrary",),               # sequential time
        ),
    )(x2d, w_ih_t, w_hh_t, b, h0_p, c0_p)

    out_tm = out2d.reshape(L_pad, B_pad, H)[:L, :B]
    return out_tm, h_n[:B], c_n[:B]


# ----------------------------------------------------------------------------
# RNNTDecoder (forward pass) in JAX + Pallas.
# ----------------------------------------------------------------------------
class RNNTDecoderPallas:
    def __init__(self, vocab_size, embed_size=256, hidden_size=256,
                 num_layers=1, embed_pad=0, key=None):
        self.vocab_size = vocab_size
        self.embed_size = embed_size
        self.hidden_size = hidden_size
        self.dlayers = num_layers

        if key is None:
            key = jax.random.PRNGKey(0)
        keys = jax.random.split(key, 1 + 4 * num_layers)

        # Embedding table (padding_idx row zeroed, as torch does at init).
        emb = jax.random.normal(keys[0], (vocab_size, embed_size), jnp.float32)
        emb = emb.at[embed_pad].set(0.0)
        self.embed_weight = emb

        # LSTM layer params (torch layout: W_ih (4H, in), W_hh (4H, H)).
        # Weights are stored pre-transposed and cast to bf16 for the MXU.
        self.layers = []
        kidx = 1
        for layer in range(num_layers):
            in_dim = embed_size if layer == 0 else hidden_size
            bound = 1.0 / jnp.sqrt(hidden_size)
            w_ih = jax.random.uniform(keys[kidx], (4 * hidden_size, in_dim),
                                      jnp.float32, -bound, bound); kidx += 1
            w_hh = jax.random.uniform(keys[kidx], (4 * hidden_size, hidden_size),
                                      jnp.float32, -bound, bound); kidx += 1
            b_ih = jax.random.uniform(keys[kidx], (4 * hidden_size,),
                                      jnp.float32, -bound, bound); kidx += 1
            b_hh = jax.random.uniform(keys[kidx], (4 * hidden_size,),
                                      jnp.float32, -bound, bound); kidx += 1
            self.layers.append(dict(
                w_ih_t=jnp.transpose(w_ih).astype(jnp.bfloat16),   # (in, 4H)
                w_hh_t=jnp.transpose(w_hh).astype(jnp.bfloat16),   # (H, 4H)
                b=(b_ih + b_hh).reshape(1, 4 * hidden_size),       # (1, 4H) f32
            ))

    def init_state(self, batch_size):
        h = jnp.zeros((self.dlayers, batch_size, self.hidden_size), jnp.float32)
        c = jnp.zeros((self.dlayers, batch_size, self.hidden_size), jnp.float32)
        return h, c

    def forward(self, labels, label_lens=None, states=None):
        """labels: (B, L) int32 -> dec_out: (B, L, D_dec)."""
        B, L = labels.shape
        if states is None:
            states = self.init_state(B)
        h_prev, c_prev = states

        # Embedding gather produced time-major directly (transpose the tiny
        # int32 labels, not the (B,L,E) activations).  dropout_embed p=0.
        x_tm = jnp.take(self.embed_weight, labels.T, axis=0)  # (L, B, E)
        x_tm = x_tm.astype(jnp.bfloat16)

        out_tm = x_tm
        h_next, c_next = [], []
        for layer in range(self.dlayers):
            p = self.layers[layer]
            out_tm, h_n, c_n = lstm_layer_pallas(
                x_tm, p["w_ih_t"], p["w_hh_t"], p["b"],
                h_prev[layer], c_prev[layer])
            h_next.append(h_n)
            c_next.append(c_n)
            x_tm = out_tm.astype(jnp.bfloat16)   # next layer input; dropout p=0

        # Back to the PyTorch batch-first output convention (B, U, D_dec).
        dec_out = jnp.transpose(out_tm, (1, 0, 2))
        return dec_out, (jnp.stack(h_next), jnp.stack(c_next))


# ----------------------------------------------------------------------------
# Pure-JAX reference (mirrors the kernel math: bf16 matmuls, f32 accumulation,
# f32 gate elementwise) for correctness check.
# ----------------------------------------------------------------------------
def lstm_reference_bf16(x_tm_bf16, w_ih_t, w_hh_t, b, h0, c0):
    L, B, E = x_tm_bf16.shape
    H = h0.shape[-1]
    gates_x = jnp.dot(x_tm_bf16.reshape(L * B, E), w_ih_t,
                      preferred_element_type=jnp.float32)
    gates_x = (gates_x + b).reshape(L, B, 4 * H)

    def step(carry, gx_t):
        h, c = carry
        gates = gx_t + jnp.dot(h.astype(jnp.bfloat16), w_hh_t,
                               preferred_element_type=jnp.float32)
        i = jax.nn.sigmoid(gates[:, 0 * H:1 * H])
        f = jax.nn.sigmoid(gates[:, 1 * H:2 * H])
        g = jnp.tanh(gates[:, 2 * H:3 * H])
        o = jax.nn.sigmoid(gates[:, 3 * H:4 * H])
        c = f * c + i * g
        h = o * jnp.tanh(c)
        return (h, c), h

    (h_n, c_n), out_tm = lax.scan(step, (h0, c0), gates_x)
    return out_tm, h_n, c_n


if __name__ == "__main__":
    # Small shapes: B=2, L=8, vocab=32, embed=64, hidden=128 (lane-aligned 4H).
    B, L = 2, 8
    VOCAB, E, H = 32, 64, 128

    key = jax.random.PRNGKey(0)
    k_lab, k_params = jax.random.split(key)

    labels = jax.random.randint(k_lab, (B, L), 0, VOCAB, dtype=jnp.int32)
    label_lens = jnp.full((B,), L, dtype=jnp.int32)

    dec = RNNTDecoderPallas(vocab_size=VOCAB, embed_size=E, hidden_size=H,
                            num_layers=1, embed_pad=0, key=k_params)

    dec_out, (h_n, c_n) = dec.forward(labels, label_lens)
    dec_out = jax.block_until_ready(dec_out)
    assert dec_out.shape == (B, L, H)
    assert h_n.shape == (1, B, H) and c_n.shape == (1, B, H)

    # Reference check against a pure-JAX LSTM with identical bf16/f32 math.
    x_tm = jnp.take(dec.embed_weight, labels.T, axis=0).astype(jnp.bfloat16)
    p = dec.layers[0]
    ref_out_tm, ref_h, ref_c = lstm_reference_bf16(
        x_tm, p["w_ih_t"], p["w_hh_t"], p["b"],
        jnp.zeros((B, H), jnp.float32), jnp.zeros((B, H), jnp.float32))
    ref_out = jnp.transpose(ref_out_tm, (1, 0, 2))

    max_err = float(jnp.max(jnp.abs(dec_out - ref_out)))
    assert jnp.allclose(dec_out, ref_out, atol=2e-3, rtol=2e-3), max_err
    assert jnp.allclose(h_n[0], ref_h, atol=2e-3, rtol=2e-3)
    assert jnp.allclose(c_n[0], ref_c, atol=2e-3, rtol=2e-3)

    print("KERNEL_OK")
</pallas_src>

<mosaic_0001>
module attributes {stable_mosaic.version = 11 : i64} {
  func.func @_lstm_chunk_kernel(%arg0: i32, %arg1: memref<32x64xbf16, #tpu.memory_space<vmem>>, %arg2: memref<64x512xbf16, #tpu.memory_space<vmem>>, %arg3: memref<128x512xbf16, #tpu.memory_space<vmem>>, %arg4: memref<1x512xf32, #tpu.memory_space<vmem>>, %arg5: memref<8x128xf32, #tpu.memory_space<vmem>>, %arg6: memref<8x128xf32, #tpu.memory_space<vmem>>, %arg7: memref<32x128xf32, #tpu.memory_space<vmem>>, %arg8: memref<8x128xf32, #tpu.memory_space<vmem>>, %arg9: memref<8x128xf32, #tpu.memory_space<vmem>>, %arg10: memref<32x512xf32, #tpu.memory_space<vmem>>, %arg11: memref<8x128xf32, #tpu.memory_space<vmem>>, %arg12: memref<8x128xf32, #tpu.memory_space<vmem>>) attributes {dimension_semantics = [#tpu.dimension_semantics<arbitrary>], iteration_bounds = array<i64: 2>, scalar_prefetch = 0 : i64, scratch_operands = 3 : i64, tpu.core_type = #tpu.core_type<tc>, window_params = [{transform_indices = @transform_0, window_bounds = array<i64: 32, 64>}, {pipeline_mode = #tpu.pipeline_mode<synchronous>, transform_indices = @transform_1, window_bounds = array<i64: 64, 512>}, {pipeline_mode = #tpu.pipeline_mode<synchronous>, transform_indices = @transform_2, window_bounds = array<i64: 128, 512>}, {pipeline_mode = #tpu.pipeline_mode<synchronous>, transform_indices = @transform_3, window_bounds = array<i64: 1, 512>}, {pipeline_mode = #tpu.pipeline_mode<synchronous>, transform_indices = @transform_4, window_bounds = array<i64: 8, 128>}, {pipeline_mode = #tpu.pipeline_mode<synchronous>, transform_indices = @transform_5, window_bounds = array<i64: 8, 128>}, {transform_indices = @transform_6, window_bounds = array<i64: 32, 128>}, {pipeline_mode = #tpu.pipeline_mode<synchronous>, transform_indices = @transform_7, window_bounds = array<i64: 8, 128>}, {pipeline_mode = #tpu.pipeline_mode<synchronous>, transform_indices = @transform_8, window_bounds = array<i64: 8, 128>}]} {
    %c0_i32 = arith.constant 0 : i32
    %0 = arith.cmpi eq, %arg0, %c0_i32 : i32
    %1 = arith.extui %0 : i1 to i32
    %c0_i32_0 = arith.constant 0 : i32
    %2 = arith.cmpi ne, %1, %c0_i32_0 : i32
    scf.if %2 {
      %c0_56 = arith.constant 0 : index
      %c0_57 = arith.constant 0 : index
      %158 = vector.load %arg5[%c0_56, %c0_57] : memref<8x128xf32, #tpu.memory_space<vmem>>, vector<8x128xf32>
      %c0_58 = arith.constant 0 : index
      %c0_59 = arith.constant 0 : index
      %159 = vector.load %arg11[%c0_58, %c0_59] : memref<8x128xf32, #tpu.memory_space<vmem>>, vector<8x128xf32>
      tpu.vector_store %arg11[%c0_58, %c0_59], %158 {strides = array<i32>} : memref<8x128xf32, #tpu.memory_space<vmem>>, vector<8x128xf32>,
      %c0_60 = arith.constant 0 : index
      %c0_61 = arith.constant 0 : index
      %160 = vector.load %arg6[%c0_60, %c0_61] : memref<8x128xf32, #tpu.memory_space<vmem>>, vector<8x128xf32>
      %c0_62 = arith.constant 0 : index
      %c0_63 = arith.constant 0 : index
      %161 = vector.load %arg12[%c0_62, %c0_63] : memref<8x128xf32, #tpu.memory_space<vmem>>, vector<8x128xf32>
      tpu.vector_store %arg12[%c0_62, %c0_63], %160 {strides = array<i32>} : memref<8x128xf32, #tpu.memory_space<vmem>>, vector<8x128xf32>,
    } else {
    }
    %c0 = arith.constant 0 : index
    %c0_1 = arith.constant 0 : index
    %3 = vector.load %arg1[%c0, %c0_1] : memref<32x64xbf16, #tpu.memory_space<vmem>>, vector<32x64xbf16>
    %c0_2 = arith.constant 0 : index
    %c0_3 = arith.constant 0 : index
    %4 = vector.load %arg2[%c0_2, %c0_3] : memref<64x512xbf16, #tpu.memory_space<vmem>>, vector<64x512xbf16>
    %cst = arith.constant dense<0.000000e+00> : vector<32x512xf32>
    %5 = tpu.matmul %3, %4, %cst {dimension_numbers = #tpu.dot_dimension_numbers<[1], [0], [0], [1], [0, 0, 1, 1], [], []>} : vector<32x64xbf16>, vector<64x512xbf16>, vector<32x512xf32> -> vector<32x512xf32>
    %c0_4 = arith.constant 0 : index
    %c0_5 = arith.constant 0 : index
    %6 = vector.load %arg4[%c0_4, %c0_5] : memref<1x512xf32, #tpu.memory_space<vmem>>, vector<1x512xf32>
    %7 = vector.broadcast %6 : vector<1x512xf32> to vector<32x512xf32>
    %8 = arith.addf %5, %7 : vector<32x512xf32>
    %c0_6 = arith.constant 0 : index
    %c0_7 = arith.constant 0 : index
    %9 = vector.load %arg10[%c0_6, %c0_7] : memref<32x512xf32, #tpu.memory_space<vmem>>, vector<32x512xf32>
    tpu.vector_store %arg10[%c0_6, %c0_7], %8 {strides = array<i32>} : memref<32x512xf32, #tpu.memory_space<vmem>>, vector<32x512xf32>,
    %c0_8 = arith.constant 0 : index
    %c0_9 = arith.constant 0 : index
    %10 = vector.load %arg3[%c0_8, %c0_9] : memref<128x512xbf16, #tpu.memory_space<vmem>>, vector<128x512xbf16>
    %c0_10 = arith.constant 0 : index
    %c0_11 = arith.constant 0 : index
    %11 = vector.load %arg11[%c0_10, %c0_11] : memref<8x128xf32, #tpu.memory_space<vmem>>, vector<8x128xf32>
    %c0_12 = arith.constant 0 : index
    %c0_13 = arith.constant 0 : index
    %12 = vector.load %arg12[%c0_12, %c0_13] : memref<8x128xf32, #tpu.memory_space<vmem>>, vector<8x128xf32>
    %c0_14 = arith.constant 0 : index
    %c0_15 = arith.constant 0 : index
    %13 = vector.load %arg10[%c0_14, %c0_15] : memref<32x512xf32, #tpu.memory_space<vmem>>, vector<8x512xf32>
    %14 = arith.truncf %11 : vector<8x128xf32> to vector<8x128xbf16>
    %cst_16 = arith.constant dense<0.000000e+00> : vector<8x512xf32>
    %15 = tpu.matmul %14, %10, %cst_16 {dimension_numbers = #tpu.dot_dimension_numbers<[1], [0], [0], [1], [0, 0, 1, 1], [], []>} : vector<8x128xbf16>, vector<128x512xbf16>, vector<8x512xf32> -> vector<8x512xf32>
    %16 = arith.addf %13, %15 : vector<8x512xf32>
    %17 = vector.extract_strided_slice %16 {offsets = [0, 0], sizes = [8, 128], strides = [1, 1]} : vector<8x512xf32> to vector<8x128xf32>
    %18 = arith.negf %17 : vector<8x128xf32>
    %19 = math.exp %18 : vector<8x128xf32>
    %cst_17 = arith.constant 1.000000e+00 : f32
    %20 = vector.broadcast %cst_17 : f32 to vector<8x128xf32>
    %21 = arith.addf %20, %19 : vector<8x128xf32>
    %22 = arith.divf %20, %21 : vector<8x128xf32>
    %23 = vector.extract_strided_slice %16 {offsets = [0, 128], sizes = [8, 128], strides = [1, 1]} : vector<8x512xf32> to vector<8x128xf32>
    %24 = arith.negf %23 : vector<8x128xf32>
    %25 = math.exp %24 : vector<8x128xf32>
    %cst_18 = arith.constant 1.000000e+00 : f32
    %26 = vector.broadcast %cst_18 : f32 to vector<8x128xf32>
    %27 = arith.addf %26, %25 : vector<8x128xf32>
    %28 = arith.divf %26, %27 : vector<8x128xf32>
    %29 = vector.extract_strided_slice %16 {offsets = [0, 256], sizes = [8, 128], strides = [1, 1]} : vector<8x512xf32> to vector<8x128xf32>
    %30 = math.tanh %29 : vector<8x128xf32>
    %31 = vector.extract_strided_slice %16 {offsets = [0, 384], sizes = [8, 128], strides = [1, 1]} : vector<8x512xf32> to vector<8x128xf32>
    %32 = arith.negf %31 : vector<8x128xf32>
    %33 = math.exp %32 : vector<8x128xf32>
    %cst_19 = arith.constant 1.000000e+00 : f32
    %34 = vector.broadcast %cst_19 : f32 to vector<8x128xf32>
    %35 = arith.addf %34, %33 : vector<8x128xf32>
    %36 = arith.divf %34, %35 : vector<8x128xf32>
    %37 = arith.mulf %28, %12 : vector<8x128xf32>
    %38 = arith.mulf %22, %30 : vector<8x128xf32>
    %39 = arith.addf %37, %38 : vector<8x128xf32>
    %40 = math.tanh %39 : vector<8x128xf32>
    %41 = arith.mulf %36, %40 : vector<8x128xf32>
    %c4_i32 = arith.constant 4 : i32
    %42 = arith.muli %arg0, %c4_i32 : i32
    %c0_i32_20 = arith.constant 0 : i32
    %43 = arith.addi %42, %c0_i32_20 : i32
    %c8_i32 = arith.constant 8 : i32
    %44 = arith.cmpi slt, %43, %c8_i32 : i32
    %45 = arith.select %44, %41, %11 : vector<8x128xf32>
    %46 = arith.select %44, %39, %12 : vector<8x128xf32>
    %c0_21 = arith.constant 0 : index
    %c0_22 = arith.constant 0 : index
    %47 = vector.load %arg7[%c0_21, %c0_22] : memref<32x128xf32, #tpu.memory_space<vmem>>, vector<8x128xf32>
    tpu.vector_store %arg7[%c0_21, %c0_22], %41 {strides = array<i32>} : memref<32x128xf32, #tpu.memory_space<vmem>>, vector<8x128xf32>,
    %c8 = arith.constant 8 : index
    %c0_23 = arith.constant 0 : index
    %48 = vector.load %arg10[%c8, %c0_23] : memref<32x512xf32, #tpu.memory_space<vmem>>, vector<8x512xf32>
    %49 = arith.truncf %45 : vector<8x128xf32> to vector<8x128xbf16>
    %cst_24 = arith.constant dense<0.000000e+00> : vector<8x512xf32>
    %50 = tpu.matmul %49, %10, %cst_24 {dimension_numbers = #tpu.dot_dimension_numbers<[1], [0], [0], [1], [0, 0, 1, 1], [], []>} : vector<8x128xbf16>, vector<128x512xbf16>, vector<8x512xf32> -> vector<8x512xf32>
    %51 = arith.addf %48, %50 : vector<8x512xf32>
    %52 = vector.extract_strided_slice %51 {offsets = [0, 0], sizes = [8, 128], strides = [1, 1]} : vector<8x512xf32> to vector<8x128xf32>
    %53 = arith.negf %52 : vector<8x128xf32>
    %54 = math.exp %53 : vector<8x128xf32>
    %cst_25 = arith.constant 1.000000e+00 : f32
    %55 = vector.broadcast %cst_25 : f32 to vector<8x128xf32>
    %56 = arith.addf %55, %54 : vector<8x128xf32>
    %57 = arith.divf %55, %56 : vector<8x128xf32>
    %58 = vector.extract_strided_slice %51 {offsets = [0, 128], sizes = [8, 128], strides = [1, 1]} : vector<8x512xf32> to vector<8x128xf32>
    %59 = arith.negf %58 : vector<8x128xf32>
    %60 = math.exp %59 : vector<8x128xf32>
    %cst_26 = arith.constant 1.000000e+00 : f32
    %61 = vector.broadcast %cst_26 : f32 to vector<8x128xf32>
    %62 = arith.addf %61, %60 : vector<8x128xf32>
    %63 = arith.divf %61, %62 : vector<8x128xf32>
    %64 = vector.extract_strided_slice %51 {offsets = [0, 256], sizes = [8, 128], strides = [1, 1]} : vector<8x512xf32> to vector<8x128xf32>
    %65 = math.tanh %64 : vector<8x128xf32>
    %66 = vector.extract_strided_slice %51 {offsets = [0, 384], sizes = [8, 128], strides = [1, 1]} : vector<8x512xf32> to vector<8x128xf32>
    %67 = arith.negf %66 : vector<8x128xf32>
    %68 = math.exp %67 : vector<8x128xf32>
    %cst_27 = arith.constant 1.000000e+00 : f32
    %69 = vector.broadcast %cst_27 : f32 to vector<8x128xf32>
    %70 = arith.addf %69, %68 : vector<8x128xf32>
    %71 = arith.divf %69, %70 : vector<8x128xf32>
    %72 = arith.mulf %63, %46 : vector<8x128xf32>
    %73 = arith.mulf %57, %65 : vector<8x128xf32>
    %74 = arith.addf %72, %73 : vector<8x128xf32>
    %75 = math.tanh %74 : vector<8x128xf32>
    %76 = arith.mulf %71, %75 : vector<8x128xf32>
    %c4_i32_28 = arith.constant 4 : i32
    %77 = arith.muli %arg0, %c4_i32_28 : i32
    %c1_i32 = arith.constant 1 : i32
    %78 = arith.addi %77, %c1_i32 : i32
    %c8_i32_29 = arith.constant 8 : i32
    %79 = arith.cmpi slt, %78, %c8_i32_29 : i32
    %80 = arith.select %79, %76, %45 : vector<8x128xf32>
    %81 = arith.select %79, %74, %46 : vector<8x128xf32>
    %c8_30 = arith.constant 8 : index
    %c0_31 = arith.constant 0 : index
    %82 = vector.load %arg7[%c8_30, %c0_31] : memref<32x128xf32, #tpu.memory_space<vmem>>, vector<8x128xf32>
    tpu.vector_store %arg7[%c8_30, %c0_31], %76 {strides = array<i32>} : memref<32x128xf32, #tpu.memory_space<vmem>>, vector<8x128xf32>,
    %c16 = arith.constant 16 : index
    %c0_32 = arith.constant 0 : index
    %83 = vector.load %arg10[%c16, %c0_32] : memref<32x512xf32, #tpu.memory_space<vmem>>, vector<8x512xf32>
    %84 = arith.truncf %80 : vector<8x128xf32> to vector<8x128xbf16>
    %cst_33 = arith.constant dense<0.000000e+00> : vector<8x512xf32>
    %85 = tpu.matmul %84, %10, %cst_33 {dimension_numbers = #tpu.dot_dimension_numbers<[1], [0], [0], [1], [0, 0, 1, 1], [], []>} : vector<8x128xbf16>, vector<128x512xbf16>, vector<8x512xf32> -> vector<8x512xf32>
    %86 = arith.addf %83, %85 : vector<8x512xf32>
    %87 = vector.extract_strided_slice %86 {offsets = [0, 0], sizes = [8, 128], strides = [1, 1]} : vector<8x512xf32> to vector<8x128xf32>
    %88 = arith.negf %87 : vector<8x128xf32>
    %89 = math.exp %88 : vector<8x128xf32>
    %cst_34 = arith.constant 1.000000e+00 : f32
    %90 = vector.broadcast %cst_34 : f32 to vector<8x128xf32>
    %91 = arith.addf %90, %89 : vector<8x128xf32>
    %92 = arith.divf %90, %91 : vector<8x128xf32>
    %93 = vector.extract_strided_slice %86 {offsets = [0, 128], sizes = [8, 128], strides = [1, 1]} : vector<8x512xf32> to vector<8x128xf32>
    %94 = arith.negf %93 : vector<8x128xf32>
    %95 = math.exp %94 : vector<8x128xf32>
    %cst_35 = arith.constant 1.000000e+00 : f32
    %96 = vector.broadcast %cst_35 : f32 to vector<8x128xf32>
    %97 = arith.addf %96, %95 : vector<8x128xf32>
    %98 = arith.divf %96, %97 : vector<8x128xf32>
    %99 = vector.extract_strided_slice %86 {offsets = [0, 256], sizes = [8, 128], strides = [1, 1]} : vector<8x512xf32> to vector<8x128xf32>
    %100 = math.tanh %99 : vector<8x128xf32>
    %101 = vector.extract_strided_slice %86 {offsets = [0, 384], sizes = [8, 128], strides = [1, 1]} : vector<8x512xf32> to vector<8x128xf32>
    %102 = arith.negf %101 : vector<8x128xf32>
    %103 = math.exp %102 : vector<8x128xf32>
    %cst_36 = arith.constant 1.000000e+00 : f32
    %104 = vector.broadcast %cst_36 : f32 to vector<8x128xf32>
    %105 = arith.addf %104, %103 : vector<8x128xf32>
    %106 = arith.divf %104, %105 : vector<8x128xf32>
    %107 = arith.mulf %98, %81 : vector<8x128xf32>
    %108 = arith.mulf %92, %100 : vector<8x128xf32>
    %109 = arith.addf %107, %108 : vector<8x128xf32>
    %110 = math.tanh %109 : vector<8x128xf32>
    %111 = arith.mulf %106, %110 : vector<8x128xf32>
    %c4_i32_37 = arith.constant 4 : i32
    %112 = arith.muli %arg0, %c4_i32_37 : i32
    %c2_i32 = arith.constant 2 : i32
    %113 = arith.addi %112, %c2_i32 : i32
    %c8_i32_38 = arith.constant 8 : i32
    %114 = arith.cmpi slt, %113, %c8_i32_38 : i32
    %115 = arith.select %114, %111, %80 : vector<8x128xf32>
    %116 = arith.select %114, %109, %81 : vector<8x128xf32>
    %c16_39 = arith.constant 16 : index
    %c0_40 = arith.constant 0 : index
    %117 = vector.load %arg7[%c16_39, %c0_40] : memref<32x128xf32, #tpu.memory_space<vmem>>, vector<8x128xf32>
    tpu.vector_store %arg7[%c16_39, %c0_40], %111 {strides = array<i32>} : memref<32x128xf32, #tpu.memory_space<vmem>>, vector<8x128xf32>,
    %c24 = arith.constant 24 : index
    %c0_41 = arith.constant 0 : index
    %118 = vector.load %arg10[%c24, %c0_41] : memref<32x512xf32, #tpu.memory_space<vmem>>, vector<8x512xf32>
    %119 = arith.truncf %115 : vector<8x128xf32> to vector<8x128xbf16>
    %cst_42 = arith.constant dense<0.000000e+00> : vector<8x512xf32>
    %120 = tpu.matmul %119, %10, %cst_42 {dimension_numbers = #tpu.dot_dimension_numbers<[1], [0], [0], [1], [0, 0, 1, 1], [], []>} : vector<8x128xbf16>, vector<128x512xbf16>, vector<8x512xf32> -> vector<8x512xf32>
    %121 = arith.addf %118, %120 : vector<8x512xf32>
    %122 = vector.extract_strided_slice %121 {offsets = [0, 0], sizes = [8, 128], strides = [1, 1]} : vector<8x512xf32> to vector<8x128xf32>
    %123 = arith.negf %122 : vector<8x128xf32>
    %124 = math.exp %123 : vector<8x128xf32>
    %cst_43 = arith.constant 1.000000e+00 : f32
    %125 = vector.broadcast %cst_43 : f32 to vector<8x128xf32>
    %126 = arith.addf %125, %124 : vector<8x128xf32>
    %127 = arith.divf %125, %126 : vector<8x128xf32>
    %128 = vector.extract_strided_slice %121 {offsets = [0, 128], sizes = [8, 128], strides = [1, 1]} : vector<8x512xf32> to vector<8x128xf32>
    %129 = arith.negf %128 : vector<8x128xf32>
    %130 = math.exp %129 : vector<8x128xf32>
    %cst_44 = arith.constant 1.000000e+00 : f32
    %131 = vector.broadcast %cst_44 : f32 to vector<8x128xf32>
    %132 = arith.addf %131, %130 : vector<8x128xf32>
    %133 = arith.divf %131, %132 : vector<8x128xf32>
    %134 = vector.extract_strided_slice %121 {offsets = [0, 256], sizes = [8, 128], strides = [1, 1]} : vector<8x512xf32> to vector<8x128xf32>
    %135 = math.tanh %134 : vector<8x128xf32>
    %136 = vector.extract_strided_slice %121 {offsets = [0, 384], sizes = [8, 128], strides = [1, 1]} : vector<8x512xf32> to vector<8x128xf32>
    %137 = arith.negf %136 : vector<8x128xf32>
    %138 = math.exp %137 : vector<8x128xf32>
    %cst_45 = arith.constant 1.000000e+00 : f32
    %139 = vector.broadcast %cst_45 : f32 to vector<8x128xf32>
    %140 = arith.addf %139, %138 : vector<8x128xf32>
    %141 = arith.divf %139, %140 : vector<8x128xf32>
    %142 = arith.mulf %133, %116 : vector<8x128xf32>
    %143 = arith.mulf %127, %135 : vector<8x128xf32>
    %144 = arith.addf %142, %143 : vector<8x128xf32>
    %145 = math.tanh %144 : vector<8x128xf32>
    %146 = arith.mulf %141, %145 : vector<8x128xf32>
    %c4_i32_46 = arith.constant 4 : i32
    %147 = arith.muli %arg0, %c4_i32_46 : i32
    %c3_i32 = arith.constant 3 : i32
    %148 = arith.addi %147, %c3_i32 : i32
    %c8_i32_47 = arith.constant 8 : i32
    %149 = arith.cmpi slt, %148, %c8_i32_47 : i32
    %150 = arith.select %149, %146, %115 : vector<8x128xf32>
    %151 = arith.select %149, %144, %116 : vector<8x128xf32>
    %c24_48 = arith.constant 24 : index
    %c0_49 = arith.constant 0 : index
    %152 = vector.load %arg7[%c24_48, %c0_49] : memref<32x128xf32, #tpu.memory_space<vmem>>, vector<8x128xf32>
    tpu.vector_store %arg7[%c24_48, %c0_49], %146 {strides = array<i32>} : memref<32x128xf32, #tpu.memory_space<vmem>>, vector<8x128xf32>,
    %c0_50 = arith.constant 0 : index
    %c0_51 = arith.constant 0 : index
    %153 = vector.load %arg11[%c0_50, %c0_51] : memref<8x128xf32, #tpu.memory_space<vmem>>, vector<8x128xf32>
    tpu.vector_store %arg11[%c0_50, %c0_51], %150 {strides = array<i32>} : memref<8x128xf32, #tpu.memory_space<vmem>>, vector<8x128xf32>,
    %c0_52 = arith.constant 0 : index
    %c0_53 = arith.constant 0 : index
    %154 = vector.load %arg12[%c0_52, %c0_53] : memref<8x128xf32, #tpu.memory_space<vmem>>, vector<8x128xf32>
    tpu.vector_store %arg12[%c0_52, %c0_53], %151 {strides = array<i32>} : memref<8x128xf32, #tpu.memory_space<vmem>>, vector<8x128xf32>,
    %c1_i32_54 = arith.constant 1 : i32
    %155 = arith.cmpi eq, %arg0, %c1_i32_54 : i32
    %156 = arith.extui %155 : i1 to i32
    %c0_i32_55 = arith.constant 0 : i32
    %157 = arith.cmpi ne, %156, %c0_i32_55 : i32
    scf.if %157 {
      %c0_56 = arith.constant 0 : index
      %c0_57 = arith.constant 0 : index
      %158 = vector.load %arg8[%c0_56, %c0_57] : memref<8x128xf32, #tpu.memory_space<vmem>>, vector<8x128xf32>
      tpu.vector_store %arg8[%c0_56, %c0_57], %150 {strides = array<i32>} : memref<8x128xf32, #tpu.memory_space<vmem>>, vector<8x128xf32>,
      %c0_58 = arith.constant 0 : index
      %c0_59 = arith.constant 0 : index
      %159 = vector.load %arg9[%c0_58, %c0_59] : memref<8x128xf32, #tpu.memory_space<vmem>>, vector<8x128xf32>
      tpu.vector_store %arg9[%c0_58, %c0_59], %151 {strides = array<i32>} : memref<8x128xf32, #tpu.memory_space<vmem>>, vector<8x128xf32>,
    } else {
    }
    return
  }
  func.func @transform_0(%arg0: i32) -> (i32, i32) {
    %c0_i32 = arith.constant 0 : i32
    %c0_i32_0 = arith.constant 0 : i32
    return %arg0, %c0_i32 : i32, i32
  }
  func.func @transform_1(%arg0: i32) -> (i32, i32) {
    %c0_i32 = arith.constant 0 : i32
    %c0_i32_0 = arith.constant 0 : i32
    %c0_i32_1 = arith.constant 0 : i32
    return %c0_i32, %c0_i32_0 : i32, i32
  }
  func.func @transform_2(%arg0: i32) -> (i32, i32) {
    %c0_i32 = arith.constant 0 : i32
    %c0_i32_0 = arith.constant 0 : i32
    %c0_i32_1 = arith.constant 0 : i32
    return %c0_i32, %c0_i32_0 : i32, i32
  }
  func.func @transform_3(%arg0: i32) -> (i32, i32) {
    %c0_i32 = arith.constant 0 : i32
    %c0_i32_0 = arith.constant 0 : i32
    %c0_i32_1 = arith.constant 0 : i32
    return %c0_i32, %c0_i32_0 : i32, i32
  }
  func.func @transform_4(%arg0: i32) -> (i32, i32) {
    %c0_i32 = arith.constant 0 : i32
    %c0_i32_0 = arith.constant 0 : i32
    %c0_i32_1 = arith.constant 0 : i32
    return %c0_i32, %c0_i32_0 : i32, i32
  }
  func.func @transform_5(%arg0: i32) -> (i32, i32) {
    %c0_i32 = arith.constant 0 : i32
    %c0_i32_0 = arith.constant 0 : i32
    %c0_i32_1 = arith.constant 0 : i32
    return %c0_i32, %c0_i32_0 : i32, i32
  }
  func.func @transform_6(%arg0: i32) -> (i32, i32) {
    %c0_i32 = arith.constant 0 : i32
    %c0_i32_0 = arith.constant 0 : i32
    return %arg0, %c0_i32 : i32, i32
  }
  func.func @transform_7(%arg0: i32) -> (i32, i32) {
    %c0_i32 = arith.constant 0 : i32
    %c0_i32_0 = arith.constant 0 : i32
    %c0_i32_1 = arith.constant 0 : i32
    return %c0_i32, %c0_i32_0 : i32, i32
  }
  func.func @transform_8(%arg0: i32) -> (i32, i32) {
    %c0_i32 = arith.constant 0 : i32
    %c0_i32_0 = arith.constant 0 : i32
    %c0_i32_1 = arith.constant 0 : i32
    return %c0_i32, %c0_i32_0 : i32, i32
  }
}

</mosaic_0001>

<llo_original>
// kernel: tpu_custom_call.1
$region0: #{tpu_custom_call.1}
  #allocation0 [shape = 'u32[]', space=smem, size = 0x4, offset = 0x4, fixed_abs, tag = 'smem constant byte address 0x4 - core index']
  #allocation1 [shape = 'u32[144,128]{1,0:T(1,128)}', space=vmem, size = 0x12000, scoped, tag = 'internal scratch']
  #allocation2 [shape = 'f32[32,512]{1,0:T(8,128)}', space=vmem, size = 0x10000, scoped, tag = 'scratch operand']
  #allocation3 [shape = 'f32[8,128]{1,0:T(8,128)}', space=vmem, size = 0x1000, scoped, tag = 'scratch operand']
  #allocation4 [shape = 'f32[8,128]{1,0:T(8,128)}', space=vmem, size = 0x1000, scoped, tag = 'scratch operand']
  %s0 = inlined_call_operand.hbm [shape: bf16[64,64], index: 0, kind: input, shape index: {}]
  %s1 = inlined_call_operand.hbm [shape: bf16[64,512], index: 1, kind: input, shape index: {}]
  %s2 = inlined_call_operand.hbm [shape: bf16[128,512], index: 2, kind: input, shape index: {}]
  %s3 = inlined_call_operand.hbm [shape: f32[1,512], index: 3, kind: input, shape index: {}]
  %s4 = inlined_call_operand.vmem [shape: f32[8,128], index: 4, kind: input, shape index: {}]
  %s5 = inlined_call_operand.vmem [shape: f32[8,128], index: 5, kind: input, shape index: {}]
  %s6 = inlined_call_operand.hbm [shape: f32[64,128], index: 6, kind: output, shape index: {0}]
  %s7 = inlined_call_operand.hbm [shape: f32[8,128], index: 7, kind: output, shape index: {1}]
  %s8 = inlined_call_operand.hbm [shape: f32[8,128], index: 8, kind: output, shape index: {2}]
  %9 = xla_tuple %s6, %s7, %s8
  %s10 = sld [smem:[#allocation0]]
  $region97: #{tpu_custom_call.1} parent=0
    _
  %s12 = ssub.s32 1, %s10
  %s13 = scalar_select 0, %s12, %s10
  $region1: #{tpu_custom_call.1} parent=0
    #allocation5 [shape = 'u8[16384]{0}', space=vmem, size = 0x4000, scoped, tag = 'input window, operand 0']
    #allocation6 [shape = 's32[2]{0}', space=sflag, size = 0x8, scoped, tag = 'scoped memory for tpu_custom_call.1']
    #allocation7 [shape = 's32[2]{0}', space=sflag, size = 0x8, scoped, tag = 'scoped memory for tpu_custom_call.1']
    #allocation8 [shape = 'u8[65536]{0}', space=vmem, size = 0x10000, scoped, tag = 'input window, operand 1, single buffered']
    #allocation9 [shape = 's32[1]{0}', space=sflag, size = 0x4, scoped, tag = 'scoped memory for tpu_custom_call.1']
    #allocation10 [shape = 'u8[131072]{0}', space=vmem, size = 0x20000, scoped, tag = 'input window, operand 2, single buffered']
    #allocation11 [shape = 'u8[2048]{0}', space=vmem, size = 0x800, scoped, tag = 'input window, operand 3, single buffered']
    #allocation12 [shape = 's32[1]{0}', space=sflag, size = 0x4, scoped, tag = 'scoped memory for tpu_custom_call.1']
    #allocation13 [shape = 'u8[32768]{0}', space=vmem, size = 0x8000, scoped, tag = 'output window, operand 0']
    #allocation14 [shape = 'u8[4096]{0}', space=vmem, size = 0x1000, scoped, tag = 'output window, operand 1, single buffered']
    #allocation15 [shape = 's32[1]{0}', space=sflag, size = 0x4, scoped, tag = 'scoped memory for tpu_custom_call.1']
    #allocation16 [shape = 'u8[4096]{0}', space=vmem, size = 0x1000, scoped, tag = 'output window, operand 2, single buffered']
    %14 = vsyncpa [#allocation6], 0
    %s15 = scalar_lea.sflag [#allocation6], 1
    %16 = vsyncpa %s15, 0
    %17 = vsyncpa [#allocation9], 0
    %18 = vsyncpa [#allocation12], 0
    %19 = vsyncpa [#allocation7], 0
    %s20 = scalar_lea.sflag [#allocation7], 1
    %21 = vsyncpa %s20, 0
    %22 = vsyncpa [#allocation15], 0
    loop: start=0, step=1, limit=4
    $region2: #{tpu_custom_call.1} parent=1 // loop_pre_header
      _
    $region3: #{tpu_custom_call.1} parent=1 // loop_header
      %s24 = sphi 0, %s28
      %p25 = scmp.ge.s32.totalorder %s24, 4
      %s34 = sphi 0, %s36
      %s37 = sphi 0, %s34
      %s38 = sphi 0, %s37
      %s54 = sphi 0, %s38
      %s58 = sphi 0, %s58
      %s60 = sphi 0, %s58
      %s61 = sphi 0, %s60
      %s75 = sphi 0, %s61
      %s79 = sphi 0, %s79
      %s81 = sphi 0, %s79
      %s82 = sphi 0, %s81
      %s96 = sphi 0, %s82
      %s100 = sphi 0, %s100
      %s102 = sphi 0, %s100
      %s103 = sphi 0, %s102
      %s117 = sphi 0, %s103
      %s121 = sphi 0, %s121
      %s123 = sphi 0, %s121
      %s124 = sphi 0, %s123
      %s138 = sphi 0, %s124
      %s142 = sphi 0, %s142
      %s144 = sphi 0, %s142
      %s145 = sphi 0, %s144
      %s159 = sphi 0, %s145
      %s165 = sphi 0, %s167
      %s168 = sphi 0, %s165
      %s169 = sphi 0, %s168
      %s185 = sphi 0, %s169
      %s189 = sphi 0, %s189
      %s191 = sphi 0, %s189
      %s192 = sphi 0, %s191
      %s206 = sphi 0, %s192
      %s210 = sphi 0, %s210
      %s212 = sphi 0, %s210
      %s213 = sphi 0, %s212
      %s227 = sphi 0, %s213
    $region4: #{tpu_custom_call.1} parent=1 // loop_header_branch
      %27 = sbr.rel (%p25) target = $region8
    $region5: #{tpu_custom_call.1} parent=1 // loop_body
      %s29 = ssub.s32 %s24, 1
      %s30 = ssub.s32 %s24, 2
      %s31 = sadd.s32 %s24, 1
      %s32 = ssub.s32 %s24, %s31
      %p33 = scmp.eq.s32.totalorder %s32, 0
      %s35 = sadd.s32 %s34, 1
      %s36 = scalar_select %p33, %s34, %s35
      %p39 = pneg %p33
      %p40 = scmp.eq.s32.totalorder %s24, 1
      %p41 = por %p39, %p40
      %p42 = scmp.ne.s32.totalorder %s34, %s37
      %p43 = scmp.eq.s32.totalorder %s24, 0
      %p44 = por %p42, %p43
      %p45 = scmp.ne.s32.totalorder %s34, %s37
      %p46 = scmp.eq.s32.totalorder %s29, 1
      %p47 = por %p45, %p46
      %p48 = scmp.ne.s32.totalorder %s37, %s38
      %p49 = scmp.eq.s32.totalorder %s29, 0
      %p50 = por %p48, %p49
      %p51 = scmp.ne.s32.totalorder %s37, %s38
      %p52 = scmp.eq.s32.totalorder %s30, 1
      %p53 = por %p51, %p52
      %p55 = scmp.ne.s32.totalorder %s38, %s54
      %p56 = scmp.eq.s32.totalorder %s30, 0
      %p57 = por %p55, %p56
      %s59 = sadd.s32 %s58, 1
      %p62 = scmp.eq.s32.totalorder %s24, 1
      %p63 = scmp.ne.s32.totalorder %s58, %s60
      %p64 = scmp.eq.s32.totalorder %s24, 0
      %p65 = por %p63, %p64
      %p66 = scmp.ne.s32.totalorder %s58, %s60
      %p67 = scmp.eq.s32.totalorder %s29, 1
      %p68 = por %p66, %p67
      %p69 = scmp.ne.s32.totalorder %s60, %s61
      %p70 = scmp.eq.s32.totalorder %s29, 0
      %p71 = por %p69, %p70
      %p72 = scmp.ne.s32.totalorder %s60, %s61
      %p73 = scmp.eq.s32.totalorder %s30, 1
      %p74 = por %p72, %p73
      %p76 = scmp.ne.s32.totalorder %s61, %s75
      %p77 = scmp.eq.s32.totalorder %s30, 0
      %p78 = por %p76, %p77
      %s80 = sadd.s32 %s79, 1
      %p83 = scmp.eq.s32.totalorder %s24, 1
      %p84 = scmp.ne.s32.totalorder %s79, %s81
      %p85 = scmp.eq.s32.totalorder %s24, 0
      %p86 = por %p84, %p85
      %p87 = scmp.ne.s32.totalorder %s79, %s81
      %p88 = scmp.eq.s32.totalorder %s29, 1
      %p89 = por %p87, %p88
      %p90 = scmp.ne.s32.totalorder %s81, %s82
      %p91 = scmp.eq.s32.totalorder %s29, 0
      %p92 = por %p90, %p91
      %p93 = scmp.ne.s32.totalorder %s81, %s82
      %p94 = scmp.eq.s32.totalorder %s30, 1
      %p95 = por %p93, %p94
      %p97 = scmp.ne.s32.totalorder %s82, %s96
      %p98 = scmp.eq.s32.totalorder %s30, 0
      %p99 = por %p97, %p98
      %s101 = sadd.s32 %s100, 1
      %p104 = scmp.eq.s32.totalorder %s24, 1
      %p105 = scmp.ne.s32.totalorder %s100, %s102
      %p106 = scmp.eq.s32.totalorder %s24, 0
      %p107 = por %p105, %p106
      %p108 = scmp.ne.s32.totalorder %s100, %s102
      %p109 = scmp.eq.s32.totalorder %s29, 1
      %p110 = por %p108, %p109
      %p111 = scmp.ne.s32.totalorder %s102, %s103
      %p112 = scmp.eq.s32.totalorder %s29, 0
      %p113 = por %p111, %p112
      %p114 = scmp.ne.s32.totalorder %s102, %s103
      %p115 = scmp.eq.s32.totalorder %s30, 1
      %p116 = por %p114, %p115
      %p118 = scmp.ne.s32.totalorder %s103, %s117
      %p119 = scmp.eq.s32.totalorder %s30, 0
      %p120 = por %p118, %p119
      %s122 = sadd.s32 %s121, 1
      %p125 = scmp.eq.s32.totalorder %s24, 1
      %p126 = scmp.ne.s32.totalorder %s121, %s123
      %p127 = scmp.eq.s32.totalorder %s24, 0
      %p128 = por %p126, %p127
      %p129 = scmp.ne.s32.totalorder %s121, %s123
      %p130 = scmp.eq.s32.totalorder %s29, 1
      %p131 = por %p129, %p130
      %p132 = scmp.ne.s32.totalorder %s123, %s124
      %p133 = scmp.eq.s32.totalorder %s29, 0
      %p134 = por %p132, %p133
      %p135 = scmp.ne.s32.totalorder %s123, %s124
      %p136 = scmp.eq.s32.totalorder %s30, 1
      %p137 = por %p135, %p136
      %p139 = scmp.ne.s32.totalorder %s124, %s138
      %p140 = scmp.eq.s32.totalorder %s30, 0
      %p141 = por %p139, %p140
      %s143 = sadd.s32 %s142, 1
      %p146 = scmp.eq.s32.totalorder %s24, 1
      %p147 = scmp.ne.s32.totalorder %s142, %s144
      %p148 = scmp.eq.s32.totalorder %s24, 0
      %p149 = por %p147, %p148
      %p150 = scmp.ne.s32.totalorder %s142, %s144
      %p151 = scmp.eq.s32.totalorder %s29, 1
      %p152 = por %p150, %p151
      %p153 = scmp.ne.s32.totalorder %s144, %s145
      %p154 = scmp.eq.s32.totalorder %s29, 0
      %p155 = por %p153, %p154
      %p156 = scmp.ne.s32.totalorder %s144, %s145
      %p157 = scmp.eq.s32.totalorder %s30, 1
      %p158 = por %p156, %p157
      %p160 = scmp.ne.s32.totalorder %s145, %s159
      %p161 = scmp.eq.s32.totalorder %s30, 0
      %p162 = por %p160, %p161
      %s163 = ssub.s32 %s24, %s31
      %p164 = scmp.eq.s32.totalorder %s163, 0
      %s166 = sadd.s32 %s165, 1
      %s167 = scalar_select %p164, %s165, %s166
      %p170 = pneg %p164
      %p171 = scmp.eq.s32.totalorder %s24, 1
      %p172 = por %p170, %p171
      %p173 = scmp.ne.s32.totalorder %s165, %s168
      %p174 = scmp.eq.s32.totalorder %s24, 0
      %p175 = por %p173, %p174
      %p176 = scmp.ne.s32.totalorder %s165, %s168
      %p177 = scmp.eq.s32.totalorder %s29, 1
      %p178 = por %p176, %p177
      %p179 = scmp.ne.s32.totalorder %s168, %s169
      %p180 = scmp.eq.s32.totalorder %s29, 0
      %p181 = por %p179, %p180
      %p182 = scmp.ne.s32.totalorder %s168, %s169
      %p183 = scmp.eq.s32.totalorder %s30, 1
      %p184 = por %p182, %p183
      %p186 = scmp.ne.s32.totalorder %s169, %s185
      %p187 = scmp.eq.s32.totalorder %s30, 0
      %p188 = por %p186, %p187
      %s190 = sadd.s32 %s189, 1
      %p193 = scmp.eq.s32.totalorder %s24, 1
      %p194 = scmp.ne.s32.totalorder %s189, %s191
      %p195 = scmp.eq.s32.totalorder %s24, 0
      %p196 = por %p194, %p195
      %p197 = scmp.ne.s32.totalorder %s189, %s191
      %p198 = scmp.eq.s32.totalorder %s29, 1
      %p199 = por %p197, %p198
      %p200 = scmp.ne.s32.totalorder %s191, %s192
      %p201 = scmp.eq.s32.totalorder %s29, 0
      %p202 = por %p200, %p201
      %p203 = scmp.ne.s32.totalorder %s191, %s192
      %p204 = scmp.eq.s32.totalorder %s30, 1
      %p205 = por %p203, %p204
      %p207 = scmp.ne.s32.totalorder %s192, %s206
      %p208 = scmp.eq.s32.totalorder %s30, 0
      %p209 = por %p207, %p208
      %s211 = sadd.s32 %s210, 1
      %p214 = scmp.eq.s32.totalorder %s24, 1
      %p215 = scmp.ne.s32.totalorder %s210, %s212
      %p216 = scmp.eq.s32.totalorder %s24, 0
      %p217 = por %p215, %p216
      %p218 = scmp.ne.s32.totalorder %s210, %s212
      %p219 = scmp.eq.s32.totalorder %s29, 1
      %p220 = por %p218, %p219
      %p221 = scmp.ne.s32.totalorder %s212, %s213
      %p222 = scmp.eq.s32.totalorder %s29, 0
      %p223 = por %p221, %p222
      %p224 = scmp.ne.s32.totalorder %s212, %s213
      %p225 = scmp.eq.s32.totalorder %s30, 1
      %p226 = por %p224, %p225
      %p228 = scmp.ne.s32.totalorder %s213, %s227
      %p229 = scmp.eq.s32.totalorder %s30, 0
      %p230 = por %p228, %p229
      %p231 = scmp.le.s32.totalorder 1, %s24
      %p232 = scmp.lt.s32.totalorder %s24, 3
      %p233 = pnand %p231, %p232
      %p234 = pneg %p233
      // Predicated region
      $region9: #{tpu_custom_call.1} parent=5 // pred_check
        _
      $region10: #{tpu_custom_call.1} parent=5 // pred_check_branch
        %236 = sbr.rel (%p233) target = $region12
      $region11: #{tpu_custom_call.1} parent=5 // pred_region
        %s237 = ssub.s32 %s24, 1
        // Predicated region
        $region13: #{tpu_custom_call.1} parent=11 // pred_check
          %p238 = pneg %p71
        $region14: #{tpu_custom_call.1} parent=11 // pred_check_branch
          %240 = sbr.rel (%p238) target = $region16
        $region15: #{tpu_custom_call.1} parent=11 // pred_region
          %s242 = ssub.s32 2048, 2048
          %243 = vsyncadd [#allocation9], %s242
          %s244 = sshll.u32 [#allocation8], 4
          %s245 = int_to_ptr.vmem [resolvable:$true] %s244
          %250 = dma.hbm_to_vmem [thread:$0]  %s1, 2048, %s245, [#allocation9], 256, 256, 16
        $region16: #{tpu_custom_call.1} parent=11 // pred_fallthru
          _
        // Predicated region
        $region17: #{tpu_custom_call.1} parent=11 // pred_check
          %p251 = pneg %p92
        $region18: #{tpu_custom_call.1} parent=11 // pred_check_branch
          %253 = sbr.rel (%p251) target = $region20
        $region19: #{tpu_custom_call.1} parent=11 // pred_region
          %s255 = ssub.s32 4096, 4096
          %256 = vsyncadd [#allocation9], %s255
          %s257 = sshll.u32 [#allocation10], 4
          %s258 = int_to_ptr.vmem [resolvable:$true] %s257
          %263 = dma.hbm_to_vmem [thread:$0]  %s2, 4096, %s258, [#allocation9], 256, 256, 16
        $region20: #{tpu_custom_call.1} parent=11 // pred_fallthru
          _
        // Predicated region
        $region21: #{tpu_custom_call.1} parent=11 // pred_check
          %p264 = pneg %p113
        $region22: #{tpu_custom_call.1} parent=11 // pred_check_branch
          %266 = sbr.rel (%p264) target = $region24
        $region23: #{tpu_custom_call.1} parent=11 // pred_region
          %s268 = ssub.s32 64, 64
          %269 = vsyncadd [#allocation12], %s268
          %s271 = sshll.u32 [#allocation11], 4
          %s272 = int_to_ptr.vmem [resolvable:$true] %s271
          %274 = dma.hbm_to_vmem [thread:$0]  %s3, 64, %s272, [#allocation12]
        $region24: #{tpu_custom_call.1} parent=11 // pred_fallthru
          _
        // Predicated region
        $region25: #{tpu_custom_call.1} parent=11 // pred_check
          %p275 = pneg %p134
        $region26: #{tpu_custom_call.1} parent=11 // pred_check_branch
          %277 = sbr.rel (%p275) target = $region28
        $region27: #{tpu_custom_call.1} parent=11 // pred_region
          _
        $region28: #{tpu_custom_call.1} parent=11 // pred_fallthru
          _
        // Predicated region
        $region29: #{tpu_custom_call.1} parent=11 // pred_check
          %p278 = pneg %p155
        $region30: #{tpu_custom_call.1} parent=11 // pred_check_branch
          %280 = sbr.rel (%p278) target = $region32
        $region31: #{tpu_custom_call.1} parent=11 // pred_region
          _
        $region32: #{tpu_custom_call.1} parent=11 // pred_fallthru
          _
      $region12: #{tpu_custom_call.1} parent=5 // pred_fallthru
        _
      %p281 = scmp.lt.s32.totalorder %s24, 2
      // Predicated region
      $region33: #{tpu_custom_call.1} parent=5 // pred_check
        %p282 = pneg %p281
      $region34: #{tpu_custom_call.1} parent=5 // pred_check_branch
        %284 = sbr.rel (%p282) target = $region36
      $region35: #{tpu_custom_call.1} parent=5 // pred_region
        // Predicated region
        $region37: #{tpu_custom_call.1} parent=35 // pred_check
          %p285 = pneg %p44
        $region38: #{tpu_custom_call.1} parent=35 // pred_check_branch
          %287 = sbr.rel (%p285) target = $region40
        $region39: #{tpu_custom_call.1} parent=35 // pred_region
          %s288 = sand.u32 %s34, 1
          %s289 = scalar_lea.sflag [#allocation6], %s288
          %s290 = sand.u32 %s34, 1
          %s291 = smul.addr %s290, 16
          %s292 = scalar_lea.vmem [#allocation5], %s291
          %s293 = smul.u32 4, %s24
          %s295 = ssub.s32 256, 256
          %296 = vsyncadd %s289, %s295
          %s297 = smul.addr %s293, 64
          %s298 = scalar_lea.hbm %s0, %s297
          %s299 = sshll.u32 %s292, 4
          %s300 = int_to_ptr.vmem [resolvable:$true] %s299
          %305 = dma.hbm_to_vmem [thread:$0]  %s298, 256, %s300, %s289, 64, 64, 4
        $region40: #{tpu_custom_call.1} parent=35 // pred_fallthru
          _
      $region36: #{tpu_custom_call.1} parent=5 // pred_fallthru
        _
      %p306 = scmp.le.s32.totalorder 1, %s24
      %p307 = scmp.lt.s32.totalorder %s24, 3
      %p308 = pnand %p306, %p307
      %p309 = pneg %p308
      // Predicated region
      $region41: #{tpu_custom_call.1} parent=5 // pred_check
        _
      $region42: #{tpu_custom_call.1} parent=5 // pred_check_branch
        %311 = sbr.rel (%p308) target = $region44
      $region43: #{tpu_custom_call.1} parent=5 // pred_region
        %s312 = ssub.s32 %s24, 1
        %s313 = sand.u32 %s37, 1
        %s314 = scalar_lea.sflag [#allocation6], %s313
        %s315 = sand.u32 %s37, 1
        %s316 = smul.addr %s315, 16
        %s317 = scalar_lea.vmem [#allocation5], %s316
        // Predicated region
        $region45: #{tpu_custom_call.1} parent=43 // pred_check
          %p318 = pneg %p50
        $region46: #{tpu_custom_call.1} parent=43 // pred_check_branch
          %320 = sbr.rel (%p318) target = $region48
        $region47: #{tpu_custom_call.1} parent=43 // pred_region
          %321 = dma.done %s314, 256
        $region48: #{tpu_custom_call.1} parent=43 // pred_fallthru
          _
        // Predicated region
        $region49: #{tpu_custom_call.1} parent=43 // pred_check
          %p322 = pneg %p71
        $region50: #{tpu_custom_call.1} parent=43 // pred_check_branch
          %324 = sbr.rel (%p322) target = $region52
        $region51: #{tpu_custom_call.1} parent=43 // pred_region
          %325 = dma.done [#allocation9], 2048
        $region52: #{tpu_custom_call.1} parent=43 // pred_fallthru
          _
        // Predicated region
        $region53: #{tpu_custom_call.1} parent=43 // pred_check
          %p326 = pneg %p92
        $region54: #{tpu_custom_call.1} parent=43 // pred_check_branch
          %328 = sbr.rel (%p326) target = $region56
        $region55: #{tpu_custom_call.1} parent=43 // pred_region
          %329 = dma.done [#allocation9], 4096
        $region56: #{tpu_custom_call.1} parent=43 // pred_fallthru
          _
        // Predicated region
        $region57: #{tpu_custom_call.1} parent=43 // pred_check
          %p330 = pneg %p113
        $region58: #{tpu_custom_call.1} parent=43 // pred_check_branch
          %332 = sbr.rel (%p330) target = $region60
        $region59: #{tpu_custom_call.1} parent=43 // pred_region
          %333 = dma.done [#allocation12], 64
        $region60: #{tpu_custom_call.1} parent=43 // pred_fallthru
          _
        %s334 = sand.u32 %s37, 1
        %s335 = scalar_lea.sflag [#allocation6], %s334
        %s336 = sand.u32 %s37, 1
        %s337 = smul.addr %s336, 16
        %s338 = scalar_lea.vmem [#allocation5], %s337
        %p339 = pneg %p50
        %p340 = pneg %p47
        %p341 = pneg %p71
        %p342 = pneg %p68
        %p343 = pneg %p92
        %p344 = pneg %p89
        %p345 = pneg %p113
        %p346 = pneg %p110
        %p347 = pneg %p134
        %p348 = pneg %p131
        %p349 = pneg %p155
        %p350 = pneg %p152
        %p351 = pneg %p181
        %p352 = pneg %p178
        %s353 = sand.u32 %s168, 1
        %s354 = scalar_lea.sflag [#allocation7], %s353
        %s355 = sand.u32 %s168, 1
        %s356 = smul.addr %s355, 32
        %s357 = scalar_lea.vmem [#allocation13], %s356
        %p358 = pneg %p202
        %p359 = pneg %p199
        %p360 = pneg %p223
        %p361 = pneg %p220
        %s362 = smul.u32 4, %s29
        %s363 = smul.u32 4, %s29
        %p365 = scmp.eq.s32.totalorder %s29, 0
        // Predicated region
        $region61: #{tpu_custom_call.1} parent=43 // pred_check
          %p366 = pneg %p365
        $region62: #{tpu_custom_call.1} parent=43 // pred_check_branch
          %368 = sbr.rel (%p366) target = $region64
        $region63: #{tpu_custom_call.1} parent=43 // pred_region
          %v369 = vld [vmem:[%s4] sm:$0xff]
          %370 = vst [vmem:[#allocation3] sm:$0xff] %v369
          %v371 = vld [vmem:[%s5] sm:$0xff]
          %372 = vst [vmem:[#allocation4] sm:$0xff] %v371
        $region64: #{tpu_custom_call.1} parent=43 // pred_fallthru
          _
        %v373 = vld [vmem:[%s317] sm:$0xf]
        %v374 = vld [vmem:[%s317 + $0x4] sm:$0xf]
        %v375 = vld [vmem:[%s317 + $0x8] sm:$0xf]
        %v376 = vld [vmem:[%s317 + $0xc] sm:$0xf]
        %v377 = vld [vmem:[#allocation8] sm:$0xff]
        %v378 = vld [vmem:[#allocation8 + $0x8] sm:$0xff]
        %v379 = vld [vmem:[#allocation8 + $0x10] sm:$0xff]
        %v380 = vld [vmem:[#allocation8 + $0x18] sm:$0xff]
        %v381 = vld [vmem:[#allocation8 + $0x20] sm:$0xff]
        %v382 = vld [vmem:[#allocation8 + $0x28] sm:$0xff]
        %v383 = vld [vmem:[#allocation8 + $0x30] sm:$0xff]
        %v384 = vld [vmem:[#allocation8 + $0x38] sm:$0xff]
        %v385 = vld [vmem:[#allocation8 + $0x40] sm:$0xff]
        %v386 = vld [vmem:[#allocation8 + $0x48] sm:$0xff]
        %v387 = vld [vmem:[#allocation8 + $0x50] sm:$0xff]
        %v388 = vld [vmem:[#allocation8 + $0x58] sm:$0xff]
        %v389 = vld [vmem:[#allocation8 + $0x60] sm:$0xff]
        %v390 = vld [vmem:[#allocation8 + $0x68] sm:$0xff]
        %v391 = vld [vmem:[#allocation8 + $0x70] sm:$0xff]
        %v392 = vld [vmem:[#allocation8 + $0x78] sm:$0xff]
        %v393 = vld [vmem:[#allocation11] sm:$0xf]
        %v395 = vlaneseq
        %v396 = vshrl.u32 %v395, 7
        %v397 = vsub.s32 0, %v396
        %v398 = vrot.slane %v393, %v397
        %v399 = vlaneseq
        %v400 = vshrl.u32 %v399, 7
        %v401 = vsub.s32 1, %v400
        %v402 = vrot.slane %v393, %v401
        %v403 = vlaneseq
        %v404 = vshrl.u32 %v403, 7
        %v405 = vsub.s32 2, %v404
        %v406 = vrot.slane %v393, %v405
        %v407 = vlaneseq
        %v408 = vshrl.u32 %v407, 7
        %v409 = vsub.s32 3, %v408
        %v410 = vrot.slane %v393, %v409
        %v419 = vunpack.c.l.b16 %v373
        %v420 = vunpack.c.l.b16 %v374
        %v421 = vunpack.c.l.b16 %v375
        %v422 = vunpack.c.l.b16 %v376
        %v423 = vpack.c.b16 %v420, %v419
        %v424 = vpack.c.b16 %v422, %v421
        %v441 = vunpack.c.l.b16 %v377
        %v442 = vunpack.c.h.b16 %v377
        %v443 = vunpack.c.l.b16 %v378
        %v444 = vunpack.c.h.b16 %v378
        %v445 = vunpack.c.l.b16 %v379
        %v446 = vunpack.c.h.b16 %v379
        %v447 = vunpack.c.l.b16 %v380
        %v448 = vunpack.c.h.b16 %v380
        %v449 = vunpack.c.l.b16 %v381
        %v450 = vunpack.c.h.b16 %v381
        %v451 = vunpack.c.l.b16 %v382
        %v452 = vunpack.c.h.b16 %v382
        %v453 = vunpack.c.l.b16 %v383
        %v454 = vunpack.c.h.b16 %v383
        %v455 = vunpack.c.l.b16 %v384
        %v456 = vunpack.c.h.b16 %v384
        %v457 = vunpack.c.l.b16 %v385
        %v458 = vunpack.c.h.b16 %v385
        %v459 = vunpack.c.l.b16 %v386
        %v460 = vunpack.c.h.b16 %v386
        %v461 = vunpack.c.l.b16 %v387
        %v462 = vunpack.c.h.b16 %v387
        %v463 = vunpack.c.l.b16 %v388
        %v464 = vunpack.c.h.b16 %v388
        %v465 = vunpack.c.l.b16 %v389
        %v466 = vunpack.c.h.b16 %v389
        %v467 = vunpack.c.l.b16 %v390
        %v468 = vunpack.c.h.b16 %v390
        %v469 = vunpack.c.l.b16 %v391
        %v470 = vunpack.c.h.b16 %v391
        %v471 = vunpack.c.l.b16 %v392
        %v472 = vunpack.c.h.b16 %v392
        %v473 = vpack.c.b16 %v445, %v441
        %v474 = vpack.c.b16 %v446, %v442
        %v475 = vpack.c.b16 %v447, %v443
        %v476 = vpack.c.b16 %v448, %v444
        %v477 = vpack.c.b16 %v453, %v449
        %v478 = vpack.c.b16 %v454, %v450
        %v479 = vpack.c.b16 %v455, %v451
        %v480 = vpack.c.b16 %v456, %v452
        %v481 = vpack.c.b16 %v461, %v457
        %v482 = vpack.c.b16 %v462, %v458
        %v483 = vpack.c.b16 %v463, %v459
        %v484 = vpack.c.b16 %v464, %v460
        %v485 = vpack.c.b16 %v469, %v465
        %v486 = vpack.c.b16 %v470, %v466
        %v487 = vpack.c.b16 %v471, %v467
        %v488 = vpack.c.b16 %v472, %v468
        %vm505 = vcmask 523264
        %v507 = vsel %vm505, %v423, 0
        %v510 = vsel %vm505, %v424, 0
        %512 = vmatprep.subr.bf16.mxu0 %v474
        %513 = vmatpush1.bf16.msra.mxu0 %v473
        %514 = vmatprep.subr.bf16.mxu0 %v478
        %515 = vmatpush1.bf16.msra.mxu0 %v477
        %516 = vmatprep.subr.bf16.mxu0 %v482
        %517 = vmatpush1.bf16.msra.mxu0 %v481
        %518 = vmatprep.subr.bf16.mxu0 %v486
        %519 = vmatpush1.bf16.msra.mxu0 %v485
        %520 = vmatprep.subr.bf16.mxu0 0
        %521 = vmatpush1.bf16.msra.mxu0 0
        %522 = vmatprep.subr.bf16.mxu0 0
        %523 = vmatpush1.bf16.msra.mxu0 0
        %524 = vmatprep.subr.bf16.mxu0 0
        %525 = vmatpush1.bf16.msra.mxu0 0
        %526 = vmatprep.subr.bf16.mxu0 0
        %527 = vmatpush1.bf16.msra.mxu0 0
        %528 = vmatprep.subr.bf16.mxu0 0
        %529 = vmatpush1.bf16.msra.mxu0 0
        %530 = vmatprep.subr.bf16.mxu0 0
        %531 = vmatpush1.bf16.msra.mxu0 0
        %532 = vmatprep.subr.bf16.mxu0 0
        %533 = vmatpush1.bf16.msra.mxu0 0
        %534 = vmatprep.subr.bf16.mxu0 0
        %535 = vmatpush1.bf16.msra.mxu0 0
        %536 = vmatprep.subr.bf16.mxu0 0
        %537 = vmatpush1.bf16.msra.mxu0 0
        %538 = vmatprep.subr.bf16.mxu0 0
        %539 = vmatpush1.bf16.msra.mxu0 0
        %540 = vmatprep.subr.bf16.mxu0 0
        %541 = vmatpush1.bf16.msra.mxu0 0
        %542 = vmatprep.subr.bf16.mxu0 0
        %543 = vmatpush1.bf16.msra.mxu0 0
        %544 = vmatprep.mubr.bf16.mxu0 0
        %545 = vmatmul.mubr.bf16.gmra.mrb[0].mxu0 %v507
        %v546 = vpop.f32.mrb[0].mxu0
        %v547 = vadd.f32 %v398, %v546
        %v548 = vpop.f32.mrb[0].mxu0
        %v549 = vadd.f32 %v402, %v548
        %v550 = vpop.f32.mrb[0].mxu0
        %v551 = vadd.f32 %v398, %v550
        %v552 = vpop.f32.mrb[0].mxu0
        %v553 = vadd.f32 %v402, %v552
        %554 = vmatprep.mubr.bf16.mxu0 0
        %555 = vmatmul.mubr.bf16.gmra.mrb[0].mxu0 %v510
        %v556 = vpop.f32.mrb[0].mxu0
        %v557 = vadd.f32 %v398, %v556
        %v558 = vpop.f32.mrb[0].mxu0
        %v559 = vadd.f32 %v402, %v558
        %v560 = vpop.f32.mrb[0].mxu0
        %v561 = vadd.f32 %v398, %v560
        %v562 = vpop.f32.mrb[0].mxu0
        %v563 = vadd.f32 %v402, %v562
        %564 = vdwg.mxu0
        %565 = vmatprep.subr.bf16.mxu0 %v476
        %566 = vmatpush1.bf16.msra.mxu0 %v475
        %567 = vmatprep.subr.bf16.mxu0 %v480
        %568 = vmatpush1.bf16.msra.mxu0 %v479
        %569 = vmatprep.subr.bf16.mxu0 %v484
        %570 = vmatpush1.bf16.msra.mxu0 %v483
        %571 = vmatprep.subr.bf16.mxu0 %v488
        %572 = vmatpush1.bf16.msra.mxu0 %v487
        %573 = vmatprep.subr.bf16.mxu0 0
        %574 = vmatpush1.bf16.msra.mxu0 0
        %575 = vmatprep.subr.bf16.mxu0 0
        %576 = vmatpush1.bf16.msra.mxu0 0
        %577 = vmatprep.subr.bf16.mxu0 0
        %578 = vmatpush1.bf16.msra.mxu0 0
        %579 = vmatprep.subr.bf16.mxu0 0
        %580 = vmatpush1.bf16.msra.mxu0 0
        %581 = vmatprep.subr.bf16.mxu0 0
        %582 = vmatpush1.bf16.msra.mxu0 0
        %583 = vmatprep.subr.bf16.mxu0 0
        %584 = vmatpush1.bf16.msra.mxu0 0
        %585 = vmatprep.subr.bf16.mxu0 0
        %586 = vmatpush1.bf16.msra.mxu0 0
        %587 = vmatprep.subr.bf16.mxu0 0
        %588 = vmatpush1.bf16.msra.mxu0 0
        %589 = vmatprep.subr.bf16.mxu0 0
        %590 = vmatpush1.bf16.msra.mxu0 0
        %591 = vmatprep.subr.bf16.mxu0 0
        %592 = vmatpush1.bf16.msra.mxu0 0
        %593 = vmatprep.subr.bf16.mxu0 0
        %594 = vmatpush1.bf16.msra.mxu0 0
        %595 = vmatprep.subr.bf16.mxu0 0
        %596 = vmatpush1.bf16.msra.mxu0 0
        %597 = vmatprep.mubr.bf16.mxu0 0
        %598 = vmatmul.mubr.bf16.gmra.mrb[0].mxu0 %v507
        %v599 = vpop.f32.mrb[0].mxu0
        %v600 = vadd.f32 %v406, %v599
        %v601 = vpop.f32.mrb[0].mxu0
        %v602 = vadd.f32 %v410, %v601
        %v603 = vpop.f32.mrb[0].mxu0
        %v604 = vadd.f32 %v406, %v603
        %v605 = vpop.f32.mrb[0].mxu0
        %v606 = vadd.f32 %v410, %v605
        %607 = vmatprep.mubr.bf16.mxu0 0
        %608 = vmatmul.mubr.bf16.gmra.mrb[0].mxu0 %v510
        %v609 = vpop.f32.mrb[0].mxu0
        %v610 = vadd.f32 %v406, %v609
        %v611 = vpop.f32.mrb[0].mxu0
        %v612 = vadd.f32 %v410, %v611
        %v613 = vpop.f32.mrb[0].mxu0
        %v614 = vadd.f32 %v406, %v613
        %v615 = vpop.f32.mrb[0].mxu0
        %v616 = vadd.f32 %v410, %v615
        %617 = vdwg.mxu0
        %618 = vst [vmem:[#allocation2] sm:$0xff] %v547
        %619 = vst [vmem:[#allocation2 + $0x8] sm:$0xff] %v549
        %620 = vst [vmem:[#allocation2 + $0x10] sm:$0xff] %v600
        %621 = vst [vmem:[#allocation2 + $0x18] sm:$0xff] %v602
        %622 = vst [vmem:[#allocation2 + $0x20] sm:$0xff] %v551
        %623 = vst [vmem:[#allocation2 + $0x28] sm:$0xff] %v553
        %624 = vst [vmem:[#allocation2 + $0x30] sm:$0xff] %v604
        %625 = vst [vmem:[#allocation2 + $0x38] sm:$0xff] %v606
        %626 = vst [vmem:[#allocation2 + $0x40] sm:$0xff] %v557
        %627 = vst [vmem:[#allocation2 + $0x48] sm:$0xff] %v559
        %628 = vst [vmem:[#allocation2 + $0x50] sm:$0xff] %v610
        %629 = vst [vmem:[#allocation2 + $0x58] sm:$0xff] %v612
        %630 = vst [vmem:[#allocation2 + $0x60] sm:$0xff] %v561
        %631 = vst [vmem:[#allocation2 + $0x68] sm:$0xff] %v563
        %632 = vst [vmem:[#allocation2 + $0x70] sm:$0xff] %v614
        %633 = vst [vmem:[#allocation2 + $0x78] sm:$0xff] %v616
        %v634 = vld [vmem:[#allocation10] sm:$0xff]
        %v635 = vld [vmem:[#allocation10 + $0x8] sm:$0xff]
        %v636 = vld [vmem:[#allocation10 + $0x10] sm:$0xff]
        %v637 = vld [vmem:[#allocation10 + $0x18] sm:$0xff]
        %v638 = vld [vmem:[#allocation10 + $0x20] sm:$0xff]
        %v639 = vld [vmem:[#allocation10 + $0x28] sm:$0xff]
        %v640 = vld [vmem:[#allocation10 + $0x30] sm:$0xff]
        %v641 = vld [vmem:[#allocation10 + $0x38] sm:$0xff]
        %v642 = vld [vmem:[#allocation10 + $0x40] sm:$0xff]
        %v643 = vld [vmem:[#allocation10 + $0x48] sm:$0xff]
        %v644 = vld [vmem:[#allocation10 + $0x50] sm:$0xff]
        %v645 = vld [vmem:[#allocation10 + $0x58] sm:$0xff]
        %v646 = vld [vmem:[#allocation10 + $0x60] sm:$0xff]
        %v647 = vld [vmem:[#allocation10 + $0x68] sm:$0xff]
        %v648 = vld [vmem:[#allocation10 + $0x70] sm:$0xff]
        %v649 = vld [vmem:[#allocation10 + $0x78] sm:$0xff]
        %v650 = vld [vmem:[#allocation10 + $0x80] sm:$0xff]
        %v651 = vld [vmem:[#allocation10 + $0x88] sm:$0xff]
        %v652 = vld [vmem:[#allocation10 + $0x90] sm:$0xff]
        %v653 = vld [vmem:[#allocation10 + $0x98] sm:$0xff]
        %v654 = vld [vmem:[#allocation10 + $0xa0] sm:$0xff]
        %v655 = vld [vmem:[#allocation10 + $0xa8] sm:$0xff]
        %v656 = vld [vmem:[#allocation10 + $0xb0] sm:$0xff]
        %v657 = vld [vmem:[#allocation10 + $0xb8] sm:$0xff]
        %v658 = vld [vmem:[#allocation10 + $0xc0] sm:$0xff]
        %v659 = vld [vmem:[#allocation10 + $0xc8] sm:$0xff]
        %v660 = vld [vmem:[#allocation10 + $0xd0] sm:$0xff]
        %v661 = vld [vmem:[#allocation10 + $0xd8] sm:$0xff]
        %v662 = vld [vmem:[#allocation10 + $0xe0] sm:$0xff]
        %v663 = vld [vmem:[#allocation10 + $0xe8] sm:$0xff]
        %v664 = vld [vmem:[#allocation10 + $0xf0] sm:$0xff]
        %v665 = vld [vmem:[#allocation10 + $0xf8] sm:$0xff]
        %v666 = vld [vmem:[#allocation3] sm:$0xff]
        %v667 = vld [vmem:[#allocation4] sm:$0xff]
        %v668 = vld [vmem:[#allocation2] sm:$0xff]
        %v669 = vld [vmem:[#allocation2 + $0x8] sm:$0xff]
        %v670 = vld [vmem:[#allocation2 + $0x10] sm:$0xff]
        %v671 = vld [vmem:[#allocation2 + $0x18] sm:$0xff]
        %v672 = vpack.c.bf16 %v666, %v666
        %v705 = vunpack.c.l.b16 %v634
        %v706 = vunpack.c.h.b16 %v634
        %v707 = vunpack.c.l.b16 %v635
        %v708 = vunpack.c.h.b16 %v635
        %v709 = vunpack.c.l.b16 %v636
        %v710 = vunpack.c.h.b16 %v636
        %v711 = vunpack.c.l.b16 %v637
        %v712 = vunpack.c.h.b16 %v637
        %v713 = vunpack.c.l.b16 %v638
        %v714 = vunpack.c.h.b16 %v638
        %v715 = vunpack.c.l.b16 %v639
        %v716 = vunpack.c.h.b16 %v639
        %v717 = vunpack.c.l.b16 %v640
        %v718 = vunpack.c.h.b16 %v640
        %v719 = vunpack.c.l.b16 %v641
        %v720 = vunpack.c.h.b16 %v641
        %v721 = vunpack.c.l.b16 %v642
        %v722 = vunpack.c.h.b16 %v642
        %v723 = vunpack.c.l.b16 %v643
        %v724 = vunpack.c.h.b16 %v643
        %v725 = vunpack.c.l.b16 %v644
        %v726 = vunpack.c.h.b16 %v644
        %v727 = vunpack.c.l.b16 %v645
        %v728 = vunpack.c.h.b16 %v645
        %v729 = vunpack.c.l.b16 %v646
        %v730 = vunpack.c.h.b16 %v646
        %v731 = vunpack.c.l.b16 %v647
        %v732 = vunpack.c.h.b16 %v647
        %v733 = vunpack.c.l.b16 %v648
        %v734 = vunpack.c.h.b16 %v648
        %v735 = vunpack.c.l.b16 %v649
        %v736 = vunpack.c.h.b16 %v649
        %v737 = vunpack.c.l.b16 %v650
        %v738 = vunpack.c.h.b16 %v650
        %v739 = vunpack.c.l.b16 %v651
        %v740 = vunpack.c.h.b16 %v651
        %v741 = vunpack.c.l.b16 %v652
        %v742 = vunpack.c.h.b16 %v652
        %v743 = vunpack.c.l.b16 %v653
        %v744 = vunpack.c.h.b16 %v653
        %v745 = vunpack.c.l.b16 %v654
        %v746 = vunpack.c.h.b16 %v654
        %v747 = vunpack.c.l.b16 %v655
        %v748 = vunpack.c.h.b16 %v655
        %v749 = vunpack.c.l.b16 %v656
        %v750 = vunpack.c.h.b16 %v656
        %v751 = vunpack.c.l.b16 %v657
        %v752 = vunpack.c.h.b16 %v657
        %v753 = vunpack.c.l.b16 %v658
        %v754 = vunpack.c.h.b16 %v658
        %v755 = vunpack.c.l.b16 %v659
        %v756 = vunpack.c.h.b16 %v659
        %v757 = vunpack.c.l.b16 %v660
        %v758 = vunpack.c.h.b16 %v660
        %v759 = vunpack.c.l.b16 %v661
        %v760 = vunpack.c.h.b16 %v661
        %v761 = vunpack.c.l.b16 %v662
        %v762 = vunpack.c.h.b16 %v662
        %v763 = vunpack.c.l.b16 %v663
        %v764 = vunpack.c.h.b16 %v663
        %v765 = vunpack.c.l.b16 %v664
        %v766 = vunpack.c.h.b16 %v664
        %v767 = vunpack.c.l.b16 %v665
        %v768 = vunpack.c.h.b16 %v665
        %v769 = vpack.c.b16 %v709, %v705
        %v770 = vpack.c.b16 %v710, %v706
        %v771 = vpack.c.b16 %v711, %v707
        %v772 = vpack.c.b16 %v712, %v708
        %v773 = vpack.c.b16 %v717, %v713
        %v774 = vpack.c.b16 %v718, %v714
        %v775 = vpack.c.b16 %v719, %v715
        %v776 = vpack.c.b16 %v720, %v716
        %v777 = vpack.c.b16 %v725, %v721
        %v778 = vpack.c.b16 %v726, %v722
        %v779 = vpack.c.b16 %v727, %v723
        %v780 = vpack.c.b16 %v728, %v724
        %v781 = vpack.c.b16 %v733, %v729
        %v782 = vpack.c.b16 %v734, %v730
        %v783 = vpack.c.b16 %v735, %v731
        %v784 = vpack.c.b16 %v736, %v732
        %v785 = vpack.c.b16 %v741, %v737
        %v786 = vpack.c.b16 %v742, %v738
        %v787 = vpack.c.b16 %v743, %v739
        %v788 = vpack.c.b16 %v744, %v740
        %v789 = vpack.c.b16 %v749, %v745
        %v790 = vpack.c.b16 %v750, %v746
        %v791 = vpack.c.b16 %v751, %v747
        %v792 = vpack.c.b16 %v752, %v748
        %v793 = vpack.c.b16 %v757, %v753
        %v794 = vpack.c.b16 %v758, %v754
        %v795 = vpack.c.b16 %v759, %v755
        %v796 = vpack.c.b16 %v760, %v756
        %v797 = vpack.c.b16 %v765, %v761
        %v798 = vpack.c.b16 %v766, %v762
        %v799 = vpack.c.b16 %v767, %v763
        %v800 = vpack.c.b16 %v768, %v764
        %833 = vmatprep.subr.bf16.mxu0 %v770
        %834 = vmatpush1.bf16.msra.mxu0 %v769
        %835 = vmatprep.subr.bf16.mxu0 %v774
        %836 = vmatpush1.bf16.msra.mxu0 %v773
        %837 = vmatprep.subr.bf16.mxu0 %v778
        %838 = vmatpush1.bf16.msra.mxu0 %v777
        %839 = vmatprep.subr.bf16.mxu0 %v782
        %840 = vmatpush1.bf16.msra.mxu0 %v781
        %841 = vmatprep.subr.bf16.mxu0 %v786
        %842 = vmatpush1.bf16.msra.mxu0 %v785
        %843 = vmatprep.subr.bf16.mxu0 %v790
        %844 = vmatpush1.bf16.msra.mxu0 %v789
        %845 = vmatprep.subr.bf16.mxu0 %v794
        %846 = vmatpush1.bf16.msra.mxu0 %v793
        %847 = vmatprep.subr.bf16.mxu0 %v798
        %848 = vmatpush1.bf16.msra.mxu0 %v797
        %849 = vmatprep.subr.bf16.mxu0 0
        %850 = vmatpush1.bf16.msra.mxu0 0
        %851 = vmatprep.subr.bf16.mxu0 0
        %852 = vmatpush1.bf16.msra.mxu0 0
        %853 = vmatprep.subr.bf16.mxu0 0
        %854 = vmatpush1.bf16.msra.mxu0 0
        %855 = vmatprep.subr.bf16.mxu0 0
        %856 = vmatpush1.bf16.msra.mxu0 0
        %857 = vmatprep.subr.bf16.mxu0 0
        %858 = vmatpush1.bf16.msra.mxu0 0
        %859 = vmatprep.subr.bf16.mxu0 0
        %860 = vmatpush1.bf16.msra.mxu0 0
        %861 = vmatprep.subr.bf16.mxu0 0
        %862 = vmatpush1.bf16.msra.mxu0 0
        %863 = vmatprep.subr.bf16.mxu0 0
        %864 = vmatpush1.bf16.msra.mxu0 0
        %865 = vmatprep.mubr.bf16.mxu0 0
        %866 = vmatmul.mubr.bf16.gmra.mrb[0].mxu0 %v672
        %v867 = vpop.f32.mrb[0].mxu0
        %v868 = vadd.f32 0.0, %v867
        %v869 = vpop.f32.mrb[0].mxu0
        %v870 = vadd.f32 0.0, %v869
        %v871 = vpop.f32.mrb[0].mxu0
        %v872 = vpop.f32.mrb[0].mxu0
        %873 = vdwg.mxu0
        %874 = vmatprep.subr.bf16.mxu0 %v772
        %875 = vmatpush1.bf16.msra.mxu0 %v771
        %876 = vmatprep.subr.bf16.mxu0 %v776
        %877 = vmatpush1.bf16.msra.mxu0 %v775
        %878 = vmatprep.subr.bf16.mxu0 %v780
        %879 = vmatpush1.bf16.msra.mxu0 %v779
        %880 = vmatprep.subr.bf16.mxu0 %v784
        %881 = vmatpush1.bf16.msra.mxu0 %v783
        %882 = vmatprep.subr.bf16.mxu0 %v788
        %883 = vmatpush1.bf16.msra.mxu0 %v787
        %884 = vmatprep.subr.bf16.mxu0 %v792
        %885 = vmatpush1.bf16.msra.mxu0 %v791
        %886 = vmatprep.subr.bf16.mxu0 %v796
        %887 = vmatpush1.bf16.msra.mxu0 %v795
        %888 = vmatprep.subr.bf16.mxu0 %v800
        %889 = vmatpush1.bf16.msra.mxu0 %v799
        %890 = vmatprep.subr.bf16.mxu0 0
        %891 = vmatpush1.bf16.msra.mxu0 0
        %892 = vmatprep.subr.bf16.mxu0 0
        %893 = vmatpush1.bf16.msra.mxu0 0
        %894 = vmatprep.subr.bf16.mxu0 0
        %895 = vmatpush1.bf16.msra.mxu0 0
        %896 = vmatprep.subr.bf16.mxu0 0
        %897 = vmatpush1.bf16.msra.mxu0 0
        %898 = vmatprep.subr.bf16.mxu0 0
        %899 = vmatpush1.bf16.msra.mxu0 0
        %900 = vmatprep.subr.bf16.mxu0 0
        %901 = vmatpush1.bf16.msra.mxu0 0
        %902 = vmatprep.subr.bf16.mxu0 0
        %903 = vmatpush1.bf16.msra.mxu0 0
        %904 = vmatprep.subr.bf16.mxu0 0
        %905 = vmatpush1.bf16.msra.mxu0 0
        %906 = vmatprep.mubr.bf16.mxu0 0
        %907 = vmatmul.mubr.bf16.gmra.mrb[0].mxu0 %v672
        %v908 = vpop.f32.mrb[0].mxu0
        %v909 = vadd.f32 0.0, %v908
        %v910 = vpop.f32.mrb[0].mxu0
        %v911 = vadd.f32 0.0, %v910
        %v912 = vpop.f32.mrb[0].mxu0
        %v913 = vpop.f32.mrb[0].mxu0
        %914 = vdwg.mxu0
        %v915 = vadd.f32 %v668, %v868
        %v916 = vadd.f32 %v669, %v870
        %v917 = vadd.f32 %v670, %v909
        %v918 = vadd.f32 %v671, %v911
        %v919 = vxor.u32 %v915, 2147483648
        %v920 = vmul.f32 %v919, 1.442695
        %v921 = vpow.pop %v920
        %v922 = vadd.f32 %v921, 1.0
        %v923 = vrcp.pop %v922
        %v924 = vmul.f32 1.0, %v923
        %v925 = vxor.u32 %v916, 2147483648
        %v926 = vmul.f32 %v925, 1.442695
        %v927 = vpow.pop %v926
        %v928 = vadd.f32 %v927, 1.0
        %v929 = vrcp.pop %v928
        %v930 = vmul.f32 1.0, %v929
        %v931 = vtanh.pop %v917
        %v932 = vxor.u32 %v918, 2147483648
        %v933 = vmul.f32 %v932, 1.442695
        %v934 = vpow.pop %v933
        %v935 = vadd.f32 %v934, 1.0
        %v936 = vrcp.pop %v935
        %v937 = vmul.f32 1.0, %v936
        %v938 = vmul.f32 %v930, %v667
        %v939 = vmul.f32 %v924, %v931
        %v940 = vadd.f32 %v938, %v939
        %v941 = vtanh.pop %v940
        %v942 = vmul.f32 %v937, %v941
        %s943 = smul.u32 %s29, 4
        %p944 = scmp.lt.s32.totalorder %s943, 8
        %s945 = scalar_select %p944, 1, 0
        %v946 = vstv %s945
        %vm947 = vcmp.eq.s32.totalorder %v946, 1
        %v948 = vsel %vm947, %v942, %v666
        %v949 = vsel %vm947, %v940, %v667
        %950 = vst [vmem:[%s357] sm:$0xff] %v942
        %v951 = vld [vmem:[#allocation2 + $0x20] sm:$0xff]
        %v952 = vld [vmem:[#allocation2 + $0x28] sm:$0xff]
        %v953 = vld [vmem:[#allocation2 + $0x30] sm:$0xff]
        %v954 = vld [vmem:[#allocation2 + $0x38] sm:$0xff]
        %v955 = vpack.c.bf16 %v948, %v948
        %956 = vmatprep.subr.bf16.mxu0 %v770
        %957 = vmatpush1.bf16.msra.mxu0 %v769
        %958 = vmatprep.subr.bf16.mxu0 %v774
        %959 = vmatpush1.bf16.msra.mxu0 %v773
        %960 = vmatprep.subr.bf16.mxu0 %v778
        %961 = vmatpush1.bf16.msra.mxu0 %v777
        %962 = vmatprep.subr.bf16.mxu0 %v782
        %963 = vmatpush1.bf16.msra.mxu0 %v781
        %964 = vmatprep.subr.bf16.mxu0 %v786
        %965 = vmatpush1.bf16.msra.mxu0 %v785
        %966 = vmatprep.subr.bf16.mxu0 %v790
        %967 = vmatpush1.bf16.msra.mxu0 %v789
        %968 = vmatprep.subr.bf16.mxu0 %v794
        %969 = vmatpush1.bf16.msra.mxu0 %v793
        %970 = vmatprep.subr.bf16.mxu0 %v798
        %971 = vmatpush1.bf16.msra.mxu0 %v797
        %972 = vmatprep.subr.bf16.mxu0 0
        %973 = vmatpush1.bf16.msra.mxu0 0
        %974 = vmatprep.subr.bf16.mxu0 0
        %975 = vmatpush1.bf16.msra.mxu0 0
        %976 = vmatprep.subr.bf16.mxu0 0
        %977 = vmatpush1.bf16.msra.mxu0 0
        %978 = vmatprep.subr.bf16.mxu0 0
        %979 = vmatpush1.bf16.msra.mxu0 0
        %980 = vmatprep.subr.bf16.mxu0 0
        %981 = vmatpush1.bf16.msra.mxu0 0
        %982 = vmatprep.subr.bf16.mxu0 0
        %983 = vmatpush1.bf16.msra.mxu0 0
        %984 = vmatprep.subr.bf16.mxu0 0
        %985 = vmatpush1.bf16.msra.mxu0 0
        %986 = vmatprep.subr.bf16.mxu0 0
        %987 = vmatpush1.bf16.msra.mxu0 0
        %988 = vmatprep.mubr.bf16.mxu0 0
        %989 = vmatmul.mubr.bf16.gmra.mrb[0].mxu0 %v955
        %v990 = vpop.f32.mrb[0].mxu0
        %v991 = vadd.f32 0.0, %v990
        %v992 = vpop.f32.mrb[0].mxu0
        %v993 = vadd.f32 0.0, %v992
        %v994 = vpop.f32.mrb[0].mxu0
        %v995 = vpop.f32.mrb[0].mxu0
        %996 = vdwg.mxu0
        %997 = vmatprep.subr.bf16.mxu0 %v772
        %998 = vmatpush1.bf16.msra.mxu0 %v771
        %999 = vmatprep.subr.bf16.mxu0 %v776
        %1000 = vmatpush1.bf16.msra.mxu0 %v775
        %1001 = vmatprep.subr.bf16.mxu0 %v780
        %1002 = vmatpush1.bf16.msra.mxu0 %v779
        %1003 = vmatprep.subr.bf16.mxu0 %v784
        %1004 = vmatpush1.bf16.msra.mxu0 %v783
        %1005 = vmatprep.subr.bf16.mxu0 %v788
        %1006 = vmatpush1.bf16.msra.mxu0 %v787
        %1007 = vmatprep.subr.bf16.mxu0 %v792
        %1008 = vmatpush1.bf16.msra.mxu0 %v791
        %1009 = vmatprep.subr.bf16.mxu0 %v796
        %1010 = vmatpush1.bf16.msra.mxu0 %v795
        %1011 = vmatprep.subr.bf16.mxu0 %v800
        %1012 = vmatpush1.bf16.msra.mxu0 %v799
        %1013 = vmatprep.subr.bf16.mxu0 0
        %1014 = vmatpush1.bf16.msra.mxu0 0
        %1015 = vmatprep.subr.bf16.mxu0 0
        %1016 = vmatpush1.bf16.msra.mxu0 0
        %1017 = vmatprep.subr.bf16.mxu0 0
        %1018 = vmatpush1.bf16.msra.mxu0 0
        %1019 = vmatprep.subr.bf16.mxu0 0
        %1020 = vmatpush1.bf16.msra.mxu0 0
        %1021 = vmatprep.subr.bf16.mxu0 0
        %1022 = vmatpush1.bf16.msra.mxu0 0
        %1023 = vmatprep.subr.bf16.mxu0 0
        %1024 = vmatpush1.bf16.msra.mxu0 0
        %1025 = vmatprep.subr.bf16.mxu0 0
        %1026 = vmatpush1.bf16.msra.mxu0 0
        %1027 = vmatprep.subr.bf16.mxu0 0
        %1028 = vmatpush1.bf16.msra.mxu0 0
        %1029 = vmatprep.mubr.bf16.mxu0 0
        %1030 = vmatmul.mubr.bf16.gmra.mrb[0].mxu0 %v955
        %v1031 = vpop.f32.mrb[0].mxu0
        %v1032 = vadd.f32 0.0, %v1031
        %v1033 = vpop.f32.mrb[0].mxu0
        %v1034 = vadd.f32 0.0, %v1033
        %v1035 = vpop.f32.mrb[0].mxu0
        %v1036 = vpop.f32.mrb[0].mxu0
        %1037 = vdwg.mxu0
        %v1038 = vadd.f32 %v951, %v991
        %v1039 = vadd.f32 %v952, %v993
        %v1040 = vadd.f32 %v953, %v1032
        %v1041 = vadd.f32 %v954, %v1034
        %v1042 = vxor.u32 %v1038, 2147483648
        %v1043 = vmul.f32 %v1042, 1.442695
        %v1044 = vpow.pop %v1043
        %v1045 = vadd.f32 %v1044, 1.0
        %v1046 = vrcp.pop %v1045
        %v1047 = vmul.f32 1.0, %v1046
        %v1048 = vxor.u32 %v1039, 2147483648
        %v1049 = vmul.f32 %v1048, 1.442695
        %v1050 = vpow.pop %v1049
        %v1051 = vadd.f32 %v1050, 1.0
        %v1052 = vrcp.pop %v1051
        %v1053 = vmul.f32 1.0, %v1052
        %v1054 = vtanh.pop %v1040
        %v1055 = vxor.u32 %v1041, 2147483648
        %v1056 = vmul.f32 %v1055, 1.442695
        %v1057 = vpow.pop %v1056
        %v1058 = vadd.f32 %v1057, 1.0
        %v1059 = vrcp.pop %v1058
        %v1060 = vmul.f32 1.0, %v1059
        %v1061 = vmul.f32 %v1053, %v949
        %v1062 = vmul.f32 %v1047, %v1054
        %v1063 = vadd.f32 %v1061, %v1062
        %v1064 = vtanh.pop %v1063
        %v1065 = vmul.f32 %v1060, %v1064
        %s1066 = sadd.s32 %s943, 1
        %p1067 = scmp.lt.s32.totalorder %s1066, 8
        %s1068 = scalar_select %p1067, 1, 0
        %v1069 = vstv %s1068
        %vm1070 = vcmp.eq.s32.totalorder %v1069, 1
        %v1071 = vsel %vm1070, %v1065, %v948
        %v1072 = vsel %vm1070, %v1063, %v949
        %1073 = vst [vmem:[%s357 + $0x8] sm:$0xff] %v1065
        %v1074 = vld [vmem:[#allocation2 + $0x40] sm:$0xff]
        %v1075 = vld [vmem:[#allocation2 + $0x48] sm:$0xff]
        %v1076 = vld [vmem:[#allocation2 + $0x50] sm:$0xff]
        %v1077 = vld [vmem:[#allocation2 + $0x58] sm:$0xff]
        %v1078 = vpack.c.bf16 %v1071, %v1071
        %1079 = vmatprep.subr.bf16.mxu0 %v770
        %1080 = vmatpush1.bf16.msra.mxu0 %v769
        %1081 = vmatprep.subr.bf16.mxu0 %v774
        %1082 = vmatpush1.bf16.msra.mxu0 %v773
        %1083 = vmatprep.subr.bf16.mxu0 %v778
        %1084 = vmatpush1.bf16.msra.mxu0 %v777
        %1085 = vmatprep.subr.bf16.mxu0 %v782
        %1086 = vmatpush1.bf16.msra.mxu0 %v781
        %1087 = vmatprep.subr.bf16.mxu0 %v786
        %1088 = vmatpush1.bf16.msra.mxu0 %v785
        %1089 = vmatprep.subr.bf16.mxu0 %v790
        %1090 = vmatpush1.bf16.msra.mxu0 %v789
        %1091 = vmatprep.subr.bf16.mxu0 %v794
        %1092 = vmatpush1.bf16.msra.mxu0 %v793
        %1093 = vmatprep.subr.bf16.mxu0 %v798
        %1094 = vmatpush1.bf16.msra.mxu0 %v797
        %1095 = vmatprep.subr.bf16.mxu0 0
        %1096 = vmatpush1.bf16.msra.mxu0 0
        %1097 = vmatprep.subr.bf16.mxu0 0
        %1098 = vmatpush1.bf16.msra.mxu0 0
        %1099 = vmatprep.subr.bf16.mxu0 0
        %1100 = vmatpush1.bf16.msra.mxu0 0
        %1101 = vmatprep.subr.bf16.mxu0 0
        %1102 = vmatpush1.bf16.msra.mxu0 0
        %1103 = vmatprep.subr.bf16.mxu0 0
        %1104 = vmatpush1.bf16.msra.mxu0 0
        %1105 = vmatprep.subr.bf16.mxu0 0
        %1106 = vmatpush1.bf16.msra.mxu0 0
        %1107 = vmatprep.subr.bf16.mxu0 0
        %1108 = vmatpush1.bf16.msra.mxu0 0
        %1109 = vmatprep.subr.bf16.mxu0 0
        %1110 = vmatpush1.bf16.msra.mxu0 0
        %1111 = vmatprep.mubr.bf16.mxu0 0
        %1112 = vmatmul.mubr.bf16.gmra.mrb[0].mxu0 %v1078
        %v1113 = vpop.f32.mrb[0].mxu0
        %v1114 = vadd.f32 0.0, %v1113
        %v1115 = vpop.f32.mrb[0].mxu0
        %v1116 = vadd.f32 0.0, %v1115
        %v1117 = vpop.f32.mrb[0].mxu0
        %v1118 = vpop.f32.mrb[0].mxu0
        %1119 = vdwg.mxu0
        %1120 = vmatprep.subr.bf16.mxu0 %v772
        %1121 = vmatpush1.bf16.msra.mxu0 %v771
        %1122 = vmatprep.subr.bf16.mxu0 %v776
        %1123 = vmatpush1.bf16.msra.mxu0 %v775
        %1124 = vmatprep.subr.bf16.mxu0 %v780
        %1125 = vmatpush1.bf16.msra.mxu0 %v779
        %1126 = vmatprep.subr.bf16.mxu0 %v784
        %1127 = vmatpush1.bf16.msra.mxu0 %v783
        %1128 = vmatprep.subr.bf16.mxu0 %v788
        %1129 = vmatpush1.bf16.msra.mxu0 %v787
        %1130 = vmatprep.subr.bf16.mxu0 %v792
        %1131 = vmatpush1.bf16.msra.mxu0 %v791
        %1132 = vmatprep.subr.bf16.mxu0 %v796
        %1133 = vmatpush1.bf16.msra.mxu0 %v795
        %1134 = vmatprep.subr.bf16.mxu0 %v800
        %1135 = vmatpush1.bf16.msra.mxu0 %v799
        %1136 = vmatprep.subr.bf16.mxu0 0
        %1137 = vmatpush1.bf16.msra.mxu0 0
        %1138 = vmatprep.subr.bf16.mxu0 0
        %1139 = vmatpush1.bf16.msra.mxu0 0
        %1140 = vmatprep.subr.bf16.mxu0 0
        %1141 = vmatpush1.bf16.msra.mxu0 0
        %1142 = vmatprep.subr.bf16.mxu0 0
        %1143 = vmatpush1.bf16.msra.mxu0 0
        %1144 = vmatprep.subr.bf16.mxu0 0
        %1145 = vmatpush1.bf16.msra.mxu0 0
        %1146 = vmatprep.subr.bf16.mxu0 0
        %1147 = vmatpush1.bf16.msra.mxu0 0
        %1148 = vmatprep.subr.bf16.mxu0 0
        %1149 = vmatpush1.bf16.msra.mxu0 0
        %1150 = vmatprep.subr.bf16.mxu0 0
        %1151 = vmatpush1.bf16.msra.mxu0 0
        %1152 = vmatprep.mubr.bf16.mxu0 0
        %1153 = vmatmul.mubr.bf16.gmra.mrb[0].mxu0 %v1078
        %v1154 = vpop.f32.mrb[0].mxu0
        %v1155 = vadd.f32 0.0, %v1154
        %v1156 = vpop.f32.mrb[0].mxu0
        %v1157 = vadd.f32 0.0, %v1156
        %v1158 = vpop.f32.mrb[0].mxu0
        %v1159 = vpop.f32.mrb[0].mxu0
        %1160 = vdwg.mxu0
        %v1161 = vadd.f32 %v1074, %v1114
        %v1162 = vadd.f32 %v1075, %v1116
        %v1163 = vadd.f32 %v1076, %v1155
        %v1164 = vadd.f32 %v1077, %v1157
        %v1165 = vxor.u32 %v1161, 2147483648
        %v1166 = vmul.f32 %v1165, 1.442695
        %v1167 = vpow.pop %v1166
        %v1168 = vadd.f32 %v1167, 1.0
        %v1169 = vrcp.pop %v1168
        %v1170 = vmul.f32 1.0, %v1169
        %v1171 = vxor.u32 %v1162, 2147483648
        %v1172 = vmul.f32 %v1171, 1.442695
        %v1173 = vpow.pop %v1172
        %v1174 = vadd.f32 %v1173, 1.0
        %v1175 = vrcp.pop %v1174
        %v1176 = vmul.f32 1.0, %v1175
        %v1177 = vtanh.pop %v1163
        %v1178 = vxor.u32 %v1164, 2147483648
        %v1179 = vmul.f32 %v1178, 1.442695
        %v1180 = vpow.pop %v1179
        %v1181 = vadd.f32 %v1180, 1.0
        %v1182 = vrcp.pop %v1181
        %v1183 = vmul.f32 1.0, %v1182
        %v1184 = vmul.f32 %v1176, %v1072
        %v1185 = vmul.f32 %v1170, %v1177
        %v1186 = vadd.f32 %v1184, %v1185
        %v1187 = vtanh.pop %v1186
        %v1188 = vmul.f32 %v1183, %v1187
        %s1189 = sadd.s32 %s943, 2
        %p1190 = scmp.lt.s32.totalorder %s1189, 8
        %s1191 = scalar_select %p1190, 1, 0
        %v1192 = vstv %s1191
        %vm1193 = vcmp.eq.s32.totalorder %v1192, 1
        %v1194 = vsel %vm1193, %v1188, %v1071
        %v1195 = vsel %vm1193, %v1186, %v1072
        %1196 = vst [vmem:[%s357 + $0x10] sm:$0xff] %v1188
        %v1197 = vld [vmem:[#allocation2 + $0x60] sm:$0xff]
        %v1198 = vld [vmem:[#allocation2 + $0x68] sm:$0xff]
        %v1199 = vld [vmem:[#allocation2 + $0x70] sm:$0xff]
        %v1200 = vld [vmem:[#allocation2 + $0x78] sm:$0xff]
        %v1201 = vpack.c.bf16 %v1194, %v1194
        %1202 = vmatprep.subr.bf16.mxu0 %v770
        %1203 = vmatpush1.bf16.msra.mxu0 %v769
        %1204 = vmatprep.subr.bf16.mxu0 %v774
        %1205 = vmatpush1.bf16.msra.mxu0 %v773
        %1206 = vmatprep.subr.bf16.mxu0 %v778
        %1207 = vmatpush1.bf16.msra.mxu0 %v777
        %1208 = vmatprep.subr.bf16.mxu0 %v782
        %1209 = vmatpush1.bf16.msra.mxu0 %v781
        %1210 = vmatprep.subr.bf16.mxu0 %v786
        %1211 = vmatpush1.bf16.msra.mxu0 %v785
        %1212 = vmatprep.subr.bf16.mxu0 %v790
        %1213 = vmatpush1.bf16.msra.mxu0 %v789
        %1214 = vmatprep.subr.bf16.mxu0 %v794
        %1215 = vmatpush1.bf16.msra.mxu0 %v793
        %1216 = vmatprep.subr.bf16.mxu0 %v798
        %1217 = vmatpush1.bf16.msra.mxu0 %v797
        %1218 = vmatprep.subr.bf16.mxu0 0
        %1219 = vmatpush1.bf16.msra.mxu0 0
        %1220 = vmatprep.subr.bf16.mxu0 0
        %1221 = vmatpush1.bf16.msra.mxu0 0
        %1222 = vmatprep.subr.bf16.mxu0 0
        %1223 = vmatpush1.bf16.msra.mxu0 0
        %1224 = vmatprep.subr.bf16.mxu0 0
        %1225 = vmatpush1.bf16.msra.mxu0 0
        %1226 = vmatprep.subr.bf16.mxu0 0
        %1227 = vmatpush1.bf16.msra.mxu0 0
        %1228 = vmatprep.subr.bf16.mxu0 0
        %1229 = vmatpush1.bf16.msra.mxu0 0
        %1230 = vmatprep.subr.bf16.mxu0 0
        %1231 = vmatpush1.bf16.msra.mxu0 0
        %1232 = vmatprep.subr.bf16.mxu0 0
        %1233 = vmatpush1.bf16.msra.mxu0 0
        %1234 = vmatprep.mubr.bf16.mxu0 0
        %1235 = vmatmul.mubr.bf16.gmra.mrb[0].mxu0 %v1201
        %v1236 = vpop.f32.mrb[0].mxu0
        %v1237 = vadd.f32 0.0, %v1236
        %v1238 = vpop.f32.mrb[0].mxu0
        %v1239 = vadd.f32 0.0, %v1238
        %v1240 = vpop.f32.mrb[0].mxu0
        %v1241 = vpop.f32.mrb[0].mxu0
        %1242 = vdwg.mxu0
        %1243 = vmatprep.subr.bf16.mxu0 %v772
        %1244 = vmatpush1.bf16.msra.mxu0 %v771
        %1245 = vmatprep.subr.bf16.mxu0 %v776
        %1246 = vmatpush1.bf16.msra.mxu0 %v775
        %1247 = vmatprep.subr.bf16.mxu0 %v780
        %1248 = vmatpush1.bf16.msra.mxu0 %v779
        %1249 = vmatprep.subr.bf16.mxu0 %v784
        %1250 = vmatpush1.bf16.msra.mxu0 %v783
        %1251 = vmatprep.subr.bf16.mxu0 %v788
        %1252 = vmatpush1.bf16.msra.mxu0 %v787
        %1253 = vmatprep.subr.bf16.mxu0 %v792
        %1254 = vmatpush1.bf16.msra.mxu0 %v791
        %1255 = vmatprep.subr.bf16.mxu0 %v796
        %1256 = vmatpush1.bf16.msra.mxu0 %v795
        %1257 = vmatprep.subr.bf16.mxu0 %v800
        %1258 = vmatpush1.bf16.msra.mxu0 %v799
        %1259 = vmatprep.subr.bf16.mxu0 0
        %1260 = vmatpush1.bf16.msra.mxu0 0
        %1261 = vmatprep.subr.bf16.mxu0 0
        %1262 = vmatpush1.bf16.msra.mxu0 0
        %1263 = vmatprep.subr.bf16.mxu0 0
        %1264 = vmatpush1.bf16.msra.mxu0 0
        %1265 = vmatprep.subr.bf16.mxu0 0
        %1266 = vmatpush1.bf16.msra.mxu0 0
        %1267 = vmatprep.subr.bf16.mxu0 0
        %1268 = vmatpush1.bf16.msra.mxu0 0
        %1269 = vmatprep.subr.bf16.mxu0 0
        %1270 = vmatpush1.bf16.msra.mxu0 0
        %1271 = vmatprep.subr.bf16.mxu0 0
        %1272 = vmatpush1.bf16.msra.mxu0 0
        %1273 = vmatprep.subr.bf16.mxu0 0
        %1274 = vmatpush1.bf16.msra.mxu0 0
        %1275 = vmatprep.mubr.bf16.mxu0 0
        %1276 = vmatmul.mubr.bf16.gmra.mrb[0].mxu0 %v1201
        %v1277 = vpop.f32.mrb[0].mxu0
        %v1278 = vadd.f32 0.0, %v1277
        %v1279 = vpop.f32.mrb[0].mxu0
        %v1280 = vadd.f32 0.0, %v1279
        %v1281 = vpop.f32.mrb[0].mxu0
        %v1282 = vpop.f32.mrb[0].mxu0
        %1283 = vdwg.mxu0
        %v1284 = vadd.f32 %v1197, %v1237
        %v1285 = vadd.f32 %v1198, %v1239
        %v1286 = vadd.f32 %v1199, %v1278
        %v1287 = vadd.f32 %v1200, %v1280
        %v1288 = vxor.u32 %v1284, 2147483648
        %v1289 = vmul.f32 %v1288, 1.442695
        %v1290 = vpow.pop %v1289
        %v1291 = vadd.f32 %v1290, 1.0
        %v1292 = vrcp.pop %v1291
        %v1293 = vmul.f32 1.0, %v1292
        %v1294 = vxor.u32 %v1285, 2147483648
        %v1295 = vmul.f32 %v1294, 1.442695
        %v1296 = vpow.pop %v1295
        %v1297 = vadd.f32 %v1296, 1.0
        %v1298 = vrcp.pop %v1297
        %v1299 = vmul.f32 1.0, %v1298
        %v1300 = vtanh.pop %v1286
        %v1301 = vxor.u32 %v1287, 2147483648
        %v1302 = vmul.f32 %v1301, 1.442695
        %v1303 = vpow.pop %v1302
        %v1304 = vadd.f32 %v1303, 1.0
        %v1305 = vrcp.pop %v1304
        %v1306 = vmul.f32 1.0, %v1305
        %v1307 = vmul.f32 %v1299, %v1195
        %v1308 = vmul.f32 %v1293, %v1300
        %v1309 = vadd.f32 %v1307, %v1308
        %v1310 = vtanh.pop %v1309
        %v1311 = vmul.f32 %v1306, %v1310
        %s1312 = sadd.s32 %s943, 3
        %p1313 = scmp.lt.s32.totalorder %s1312, 8
        %s1314 = scalar_select %p1313, 1, 0
        %v1315 = vstv %s1314
        %vm1316 = vcmp.eq.s32.totalorder %v1315, 1
        %v1317 = vsel %vm1316, %v1311, %v1194
        %v1318 = vsel %vm1316, %v1309, %v1195
        %1319 = vst [vmem:[%s357 + $0x18] sm:$0xff] %v1311
        %1320 = vst [vmem:[#allocation3] sm:$0xff] %v1317
        %1321 = vst [vmem:[#allocation4] sm:$0xff] %v1318
        %p1322 = scmp.eq.s32.totalorder %s29, 1
        // Predicated region
        $region65: #{tpu_custom_call.1} parent=43 // pred_check
          %p1323 = pneg %p1322
        $region66: #{tpu_custom_call.1} parent=43 // pred_check_branch
          %1325 = sbr.rel (%p1323) target = $region68
        $region67: #{tpu_custom_call.1} parent=43 // pred_region
          %1326 = vst [vmem:[#allocation14] sm:$0xff] %v1317
          %1327 = vst [vmem:[#allocation16] sm:$0xff] %v1318
        $region68: #{tpu_custom_call.1} parent=43 // pred_fallthru
          _
        %s1328 = sand.u32 %s168, 1
        %s1329 = scalar_lea.sflag [#allocation7], %s1328
        %s1330 = sand.u32 %s168, 1
        %s1331 = smul.addr %s1330, 32
        %s1332 = scalar_lea.vmem [#allocation13], %s1331
        // Predicated region
        $region69: #{tpu_custom_call.1} parent=43 // pred_check
          %p1333 = pneg %p178
        $region70: #{tpu_custom_call.1} parent=43 // pred_check_branch
          %1335 = sbr.rel (%p1333) target = $region72
        $region71: #{tpu_custom_call.1} parent=43 // pred_region
          %s1336 = smul.u32 4, %s29
          %s1338 = ssub.s32 512, 512
          %1339 = vsyncadd %s1329, %s1338
          %s1340 = smul.addr %s1336, 128
          %s1341 = scalar_lea.hbm %s6, %s1340
          %s1342 = sshll.u32 %s1332, 4
          %s1343 = int_to_ptr.vmem [resolvable:$true] %s1342
          %1348 = dma.vmem_to_hbm [thread:$0]  %s1343, 512, %s1341, %s1329, 128, 128, 8
        $region72: #{tpu_custom_call.1} parent=43 // pred_fallthru
          _
        // Predicated region
        $region73: #{tpu_custom_call.1} parent=43 // pred_check
          %p1349 = pneg %p199
        $region74: #{tpu_custom_call.1} parent=43 // pred_check_branch
          %1351 = sbr.rel (%p1349) target = $region76
        $region75: #{tpu_custom_call.1} parent=43 // pred_region
          %s1353 = ssub.s32 128, 128
          %1354 = vsyncadd [#allocation15], %s1353
          %s1356 = sshll.u32 [#allocation14], 4
          %s1357 = int_to_ptr.vmem [resolvable:$true] %s1356
          %1359 = dma.vmem_to_hbm [thread:$0]  %s1357, 128, %s7, [#allocation15]
        $region76: #{tpu_custom_call.1} parent=43 // pred_fallthru
          _
        // Predicated region
        $region77: #{tpu_custom_call.1} parent=43 // pred_check
          %p1360 = pneg %p220
        $region78: #{tpu_custom_call.1} parent=43 // pred_check_branch
          %1362 = sbr.rel (%p1360) target = $region80
        $region79: #{tpu_custom_call.1} parent=43 // pred_region
          %s1364 = ssub.s32 128, 128
          %1365 = vsyncadd [#allocation15], %s1364
          %s1367 = sshll.u32 [#allocation16], 4
          %s1368 = int_to_ptr.vmem [resolvable:$true] %s1367
          %1370 = dma.vmem_to_hbm [thread:$0]  %s1368, 128, %s8, [#allocation15]
        $region80: #{tpu_custom_call.1} parent=43 // pred_fallthru
          _
        // Predicated region
        $region81: #{tpu_custom_call.1} parent=43 // pred_check
          %p1371 = pneg %p199
        $region82: #{tpu_custom_call.1} parent=43 // pred_check_branch
          %1373 = sbr.rel (%p1371) target = $region84
        $region83: #{tpu_custom_call.1} parent=43 // pred_region
          %1374 = dma.done [#allocation15], 128
        $region84: #{tpu_custom_call.1} parent=43 // pred_fallthru
          _
        // Predicated region
        $region85: #{tpu_custom_call.1} parent=43 // pred_check
          %p1375 = pneg %p220
        $region86: #{tpu_custom_call.1} parent=43 // pred_check_branch
          %1377 = sbr.rel (%p1375) target = $region88
        $region87: #{tpu_custom_call.1} parent=43 // pred_region
          %1378 = dma.done [#allocation15], 128
        $region88: #{tpu_custom_call.1} parent=43 // pred_fallthru
          _
      $region44: #{tpu_custom_call.1} parent=5 // pred_fallthru
        _
      %p1379 = scmp.le.s32.totalorder 2, %s24
      // Predicated region
      $region89: #{tpu_custom_call.1} parent=5 // pred_check
        %p1380 = pneg %p1379
      $region90: #{tpu_custom_call.1} parent=5 // pred_check_branch
        %1382 = sbr.rel (%p1380) target = $region92
      $region91: #{tpu_custom_call.1} parent=5 // pred_region
        %s1383 = ssub.s32 %s24, 2
        // Predicated region
        $region93: #{tpu_custom_call.1} parent=91 // pred_check
          %p1384 = pneg %p184
        $region94: #{tpu_custom_call.1} parent=91 // pred_check_branch
          %1386 = sbr.rel (%p1384) target = $region96
        $region95: #{tpu_custom_call.1} parent=91 // pred_region
          %s1387 = sand.u32 %s169, 1
          %s1388 = scalar_lea.sflag [#allocation7], %s1387
          %s1389 = sand.u32 %s169, 1
          %s1390 = smul.addr %s1389, 32
          %s1391 = scalar_lea.vmem [#allocation13], %s1390
          %1392 = dma.done %s1388, 512
        $region96: #{tpu_custom_call.1} parent=91 // pred_fallthru
          _
      $region92: #{tpu_custom_call.1} parent=5 // pred_fallthru
        _
    $region6: #{tpu_custom_call.1} parent=1 // loop_footer
      %s28 = sadd.s32 1, %s24
    $region7: #{tpu_custom_call.1} parent=1 // loop_footer_branch
      %23 = sbr.rel target = $region3
    $region8: #{tpu_custom_call.1} parent=1 // loop_exit
      _
    %1393 = vsyncpa [#allocation6], 1
    %s1394 = scalar_lea.sflag [#allocation6], 1
    %1395 = vsyncpa %s1394, 1
    %1396 = vsyncpa [#allocation9], 1
    %1397 = vsyncpa [#allocation12], 1
    %1398 = vsyncpa [#allocation7], 1
    %s1399 = scalar_lea.sflag [#allocation7], 1
    %1400 = vsyncpa %s1399, 1
    %1401 = vsyncpa [#allocation15], 1

</llo_original>
